<compile_context>
chip_gen: v7x
topology: tpu7x:2x2x1
jax: 0.10.0
libtpu: 0.0.40
codegen_flags: <defaults>
</compile_context>

<pallas_src>
import functools

import jax
import jax.numpy as jnp
from jax import lax
from jax.experimental import pallas as pl
from jax.experimental.pallas import tpu as pltpu

GP = 128  # lane tile: padded width of each gate / hidden / output block


def _lstm_bn_linear_kernel(
    x2_ref,      # (T*BP, DP)     time-major input, batch- and lane-padded
    hc0_ref,     # (2*BP, HP)     rows [0:BP]=h0, [BP:2BP]=c0 (padded)
    w_ih_ref,    # (DP, 4*GP)     fused input->gate weights, gates [i|f|o|g]
    w_hh_ref,    # (HP, 4*GP)     fused hidden->gate weights, gates [i|f|o|g]
    misc_ref,    # (4, 4*GP)      rows: [gate bias; gamma; beta; out bias]
    w_out_ref,   # (HP, OP)       Linear weight, pre-transposed & padded
    out_ref,     # (T*BP, OP)     output sequence (time-major, padded)
    hn_ref,      # (BP, HP)
    cn_ref,      # (BP, HP)
    xw_ref,      # VMEM scratch (T*BP, 4*GP)  hoisted input projection
    seq_ref,     # VMEM scratch (T*BP, HP)    hidden-state sequence (for BN)
    *,
    T, B, BP, HP, eps,
):
    b_gates = misc_ref[0:1, :]                                    # (1, 4*GP)

    # ---- Hoisted input projection: one MXU matmul for ALL timesteps + bias.
    xw_ref[...] = (
        jnp.dot(x2_ref[...], w_ih_ref[...], preferred_element_type=jnp.float32)
        + b_gates
    )

    w_hh = w_hh_ref[...]              # loop-invariant RHS, loaded once
    h = hc0_ref[0:BP, :]              # carried in vregs (no VMEM round-trip)
    c = hc0_ref[BP:2 * BP, :]

    # T is small & static -> fully unrolled, straight-line recurrence.
    for t in range(T):
        # tile-aligned (8-sublane, 512-lane) load; independent of h so it can
        # issue ahead of the serial chain.
        x_part = xw_ref[t * BP:(t + 1) * BP, :]                   # (BP, 4*GP)
        gates = x_part + jnp.dot(h, w_hh,
                                 preferred_element_type=jnp.float32)
        # gates layout [i|f|o|g], each 128-lane aligned: slices are free.
        ifo = jax.nn.sigmoid(gates[:, 0:3 * GP])                  # one slab
        g_g = jnp.tanh(gates[:, 3 * GP:4 * GP])
        i_g = ifo[:, 0 * GP:1 * GP]
        f_g = ifo[:, 1 * GP:2 * GP]
        o_g = ifo[:, 2 * GP:3 * GP]
        c = f_g * c + i_g * g_g
        h = o_g * jnp.tanh(c)
        seq_ref[t * BP:(t + 1) * BP, :] = h     # unmasked tile store

    # Final states written once from the loop carry.
    hn_ref[...] = h
    cn_ref[...] = c

    # ---- BatchNorm1d training-mode stats over the B real rows per timestep
    #      (padded batch rows masked out), single pass sum + sum-of-squares.
    y = seq_ref[...]                                              # (T*BP, HP)
    row = lax.broadcasted_iota(jnp.int32, (T * BP, 1), 0)
    ym = jnp.where((row % BP) < B, y, 0.0)                        # mask pads
    inv_n = 1.0 / float(T * B)
    s1 = jnp.sum(ym, axis=0, keepdims=True)                       # (1, HP)
    s2 = jnp.sum(ym * ym, axis=0, keepdims=True)                  # (1, HP)
    mean = s1 * inv_n
    var = jnp.maximum(s2 * inv_n - mean * mean, 0.0)              # clamp >= 0

    gamma = misc_ref[1:2, 0:HP]
    beta = misc_ref[2:3, 0:HP]
    b_out = misc_ref[3:4, 0:GP]                                   # OP == GP

    # ---- BN affine folded into the Linear: no y_bn materialization.
    #      out = (y*scale) @ W_out + [(beta - mean*scale) @ W_out + b_out]
    scale = gamma * lax.rsqrt(var + eps)                          # (1, HP)
    w_out = w_out_ref[...]                                        # (HP, OP)
    b_eff = (
        jnp.dot(beta - mean * scale, w_out, preferred_element_type=jnp.float32)
        + b_out
    )                                                             # (1, OP)
    out_ref[...] = (
        jnp.dot(ym * scale, w_out, preferred_element_type=jnp.float32) + b_eff
    )


def _pack_gate_weights(w, k_pad, H):
    """PyTorch (4H, K) rows [i|f|g|o] -> (k_pad, 4*GP) cols [i|f|o|g], padded."""
    K = w.shape[1]
    out = jnp.zeros((k_pad, 4 * GP), jnp.float32)
    for dst, src in enumerate((0, 1, 3, 2)):          # i, f, o, g
        blk = w[src * H:(src + 1) * H, :].T.astype(jnp.float32)   # (K, H)
        out = out.at[:K, dst * GP:dst * GP + H].set(blk)
    return out


def _pack_gate_bias(b, H):
    """PyTorch (4H,) [i|f|g|o] -> (1, 4*GP) [i|f|o|g], padded."""
    out = jnp.zeros((1, 4 * GP), jnp.float32)
    for dst, src in enumerate((0, 1, 3, 2)):
        out = out.at[0, dst * GP:dst * GP + H].set(
            b[src * H:(src + 1) * H].astype(jnp.float32))
    return out


def lstm_forward(x, params, history=None):
    """x: (B, T, Din) float32, batch_first like the PyTorch module."""
    B, T, Din = x.shape
    H = params["w_hh"].shape[1]
    O = params["w_out"].shape[0]

    BP = 8           # batch padded to the 8-sublane tile
    DP = GP          # input features padded to 128 lanes
    HP = GP          # hidden padded to 128 lanes
    OP = GP          # output padded to 128 lanes

    if history is None:
        h0 = jnp.zeros((B, H), jnp.float32)
        c0 = jnp.zeros((B, H), jnp.float32)
    else:
        h0, c0 = history
        h0 = h0.reshape(B, H).astype(jnp.float32)
        c0 = c0.reshape(B, H).astype(jnp.float32)

    # time-major, batch/lane padded: row t*BP + b  <->  x[b, t]
    xt = jnp.transpose(x, (1, 0, 2)).astype(jnp.float32)          # (T, B, Din)
    x2p = (jnp.zeros((T, BP, DP), jnp.float32)
           .at[:, :B, :Din].set(xt)
           .reshape(T * BP, DP))

    hc0 = (jnp.zeros((2 * BP, HP), jnp.float32)
           .at[:B, :H].set(h0)
           .at[BP:BP + B, :H].set(c0))

    w_ih_p = _pack_gate_weights(params["w_ih"].astype(jnp.float32), DP, H)
    w_hh_p = _pack_gate_weights(params["w_hh"].astype(jnp.float32), HP, H)
    b_gates = _pack_gate_bias(params["b_ih"] + params["b_hh"], H)

    misc = (jnp.zeros((4, 4 * GP), jnp.float32)
            .at[0:1, :].set(b_gates)
            .at[1, :H].set(params["gamma"].astype(jnp.float32))
            .at[2, :H].set(params["beta"].astype(jnp.float32))
            .at[3, :O].set(params["b_out"].astype(jnp.float32)))

    w_out_p = (jnp.zeros((HP, OP), jnp.float32)
               .at[:H, :O].set(params["w_out"].T.astype(jnp.float32)))

    vmem = pl.BlockSpec(memory_space=pltpu.MemorySpace.VMEM)
    kernel = functools.partial(_lstm_bn_linear_kernel,
                               T=T, B=B, BP=BP, HP=HP, eps=1e-5)

    out2, h_n, c_n = pl.pallas_call(
        kernel,
        out_shape=(
            jax.ShapeDtypeStruct((T * BP, OP), jnp.float32),
            jax.ShapeDtypeStruct((BP, HP), jnp.float32),
            jax.ShapeDtypeStruct((BP, HP), jnp.float32),
        ),
        in_specs=[vmem] * 6,
        out_specs=(vmem, vmem, vmem),
        scratch_shapes=[
            pltpu.VMEM((T * BP, 4 * GP), jnp.float32),   # hoisted x-projection
            pltpu.VMEM((T * BP, HP), jnp.float32),       # hidden-state sequence
        ],
        compiler_params=pltpu.CompilerParams(
            # explicit guard: scratch grows with T*BP; v7x VMEM is smaller.
            vmem_limit_bytes=32 * 1024 * 1024,
        ),
    )(x2p, hc0, w_ih_p, w_hh_p, misc, w_out_p)

    out = jnp.transpose(out2.reshape(T, BP, OP)[:, :B, :O], (1, 0, 2))  # (B,T,O)
    # num_layers = 1 -> (1, B, H) like PyTorch's (num_layers, B, H)
    return out, (h_n[:B, :H][None], c_n[:B, :H][None])


def _reference_forward(x, params, history=None):
    """Pure-JAX reference mirroring the PyTorch forward (for validation)."""
    B, T, _ = x.shape
    H = params["w_hh"].shape[1]
    if history is None:
        h = jnp.zeros((B, H), jnp.float32)
        c = jnp.zeros((B, H), jnp.float32)
    else:
        h, c = history
        h, c = h[0], c[0]
    outs = []
    for t in range(T):
        gates = (
            x[:, t] @ params["w_ih"].T + params["b_ih"]
            + h @ params["w_hh"].T + params["b_hh"]
        )
        i = jax.nn.sigmoid(gates[:, :H])
        f = jax.nn.sigmoid(gates[:, H:2 * H])
        g = jnp.tanh(gates[:, 2 * H:3 * H])
        o = jax.nn.sigmoid(gates[:, 3 * H:])
        c = f * c + i * g
        h = o * jnp.tanh(c)
        outs.append(h)
    lstm_out = jnp.stack(outs, axis=1)                              # (B, T, H)
    mean = jnp.mean(lstm_out, axis=(0, 1))
    var = jnp.mean((lstm_out - mean) ** 2, axis=(0, 1))
    y = (lstm_out - mean) / jnp.sqrt(var + 1e-5) * params["gamma"] + params["beta"]
    out = jnp.einsum("bth,oh->bto", y, params["w_out"]) + params["b_out"]
    return out, (h[None], c[None])


if __name__ == "__main__":
    B, T, Din, H, O = 2, 8, 5, 20, 5

    key = jax.random.PRNGKey(0)
    ks = jax.random.split(key, 7)
    s = 1.0 / float(jnp.sqrt(H))
    params = dict(
        w_ih=jax.random.uniform(ks[0], (4 * H, Din), jnp.float32, -s, s),
        w_hh=jax.random.uniform(ks[1], (4 * H, H), jnp.float32, -s, s),
        b_ih=jax.random.uniform(ks[2], (4 * H,), jnp.float32, -s, s),
        b_hh=jax.random.uniform(ks[3], (4 * H,), jnp.float32, -s, s),
        gamma=jnp.ones((H,), jnp.float32),       # BatchNorm1d default weight
        beta=jnp.zeros((H,), jnp.float32),       # BatchNorm1d default bias
        w_out=jax.random.uniform(ks[4], (O, H), jnp.float32, -s, s),
        b_out=jax.random.uniform(ks[5], (O,), jnp.float32, -s, s),
    )
    x = jax.random.normal(ks[6], (B, T, Din), jnp.float32)

    out, (h_n, c_n) = jax.block_until_ready(lstm_forward(x, params))

    assert out.shape == (B, T, O)
    assert h_n.shape == (1, B, H) and c_n.shape == (1, B, H)

    out_ref, (h_ref, c_ref) = _reference_forward(x, params)
    assert jnp.allclose(out, out_ref, atol=1e-3, rtol=1e-3)
    assert jnp.allclose(h_n, h_ref, atol=1e-4, rtol=1e-4)
    assert jnp.allclose(c_n, c_ref, atol=1e-4, rtol=1e-4)

    print("KERNEL_OK")
</pallas_src>

<mosaic_0001>
module attributes {stable_mosaic.version = 11 : i64} {
  func.func @_lstm_bn_linear_kernel(%arg0: memref<64x128xf32, #tpu.memory_space<vmem>>, %arg1: memref<16x128xf32, #tpu.memory_space<vmem>>, %arg2: memref<128x512xf32, #tpu.memory_space<vmem>>, %arg3: memref<128x512xf32, #tpu.memory_space<vmem>>, %arg4: memref<4x512xf32, #tpu.memory_space<vmem>>, %arg5: memref<128x128xf32, #tpu.memory_space<vmem>>, %arg6: memref<64x128xf32, #tpu.memory_space<vmem>>, %arg7: memref<8x128xf32, #tpu.memory_space<vmem>>, %arg8: memref<8x128xf32, #tpu.memory_space<vmem>>, %arg9: memref<64x512xf32, #tpu.memory_space<vmem>>, %arg10: memref<64x128xf32, #tpu.memory_space<vmem>>) attributes {dimension_semantics = [], scalar_prefetch = 0 : i64, scratch_operands = 2 : i64, tpu.core_type = #tpu.core_type<tc>} {
    %c0 = arith.constant 0 : index
    %c0_0 = arith.constant 0 : index
    %0 = vector.load %arg4[%c0, %c0_0] : memref<4x512xf32, #tpu.memory_space<vmem>>, vector<1x512xf32>
    %c0_1 = arith.constant 0 : index
    %c0_2 = arith.constant 0 : index
    %1 = vector.load %arg0[%c0_1, %c0_2] : memref<64x128xf32, #tpu.memory_space<vmem>>, vector<64x128xf32>
    %c0_3 = arith.constant 0 : index
    %c0_4 = arith.constant 0 : index
    %2 = vector.load %arg2[%c0_3, %c0_4] : memref<128x512xf32, #tpu.memory_space<vmem>>, vector<128x512xf32>
    %cst = arith.constant dense<0.000000e+00> : vector<64x512xf32>
    %3 = tpu.matmul %1, %2, %cst {dimension_numbers = #tpu.dot_dimension_numbers<[1], [0], [0], [1], [0, 0, 1, 1], [], []>} : vector<64x128xf32>, vector<128x512xf32>, vector<64x512xf32> -> vector<64x512xf32>
    %4 = vector.broadcast %0 : vector<1x512xf32> to vector<64x512xf32>
    %5 = arith.addf %3, %4 : vector<64x512xf32>
    %c0_5 = arith.constant 0 : index
    %c0_6 = arith.constant 0 : index
    %6 = vector.load %arg9[%c0_5, %c0_6] : memref<64x512xf32, #tpu.memory_space<vmem>>, vector<64x512xf32>
    tpu.vector_store %arg9[%c0_5, %c0_6], %5 {strides = array<i32>} : memref<64x512xf32, #tpu.memory_space<vmem>>, vector<64x512xf32>,
    %c0_7 = arith.constant 0 : index
    %c0_8 = arith.constant 0 : index
    %7 = vector.load %arg3[%c0_7, %c0_8] : memref<128x512xf32, #tpu.memory_space<vmem>>, vector<128x512xf32>
    %c0_9 = arith.constant 0 : index
    %c0_10 = arith.constant 0 : index
    %8 = vector.load %arg1[%c0_9, %c0_10] : memref<16x128xf32, #tpu.memory_space<vmem>>, vector<8x128xf32>
    %c8 = arith.constant 8 : index
    %c0_11 = arith.constant 0 : index
    %9 = vector.load %arg1[%c8, %c0_11] : memref<16x128xf32, #tpu.memory_space<vmem>>, vector<8x128xf32>
    %c0_12 = arith.constant 0 : index
    %c0_13 = arith.constant 0 : index
    %10 = vector.load %arg9[%c0_12, %c0_13] : memref<64x512xf32, #tpu.memory_space<vmem>>, vector<8x512xf32>
    %cst_14 = arith.constant dense<0.000000e+00> : vector<8x512xf32>
    %11 = tpu.matmul %8, %7, %cst_14 {dimension_numbers = #tpu.dot_dimension_numbers<[1], [0], [0], [1], [0, 0, 1, 1], [], []>} : vector<8x128xf32>, vector<128x512xf32>, vector<8x512xf32> -> vector<8x512xf32>
    %12 = arith.addf %10, %11 : vector<8x512xf32>
    %13 = vector.extract_strided_slice %12 {offsets = [0, 0], sizes = [8, 384], strides = [1, 1]} : vector<8x512xf32> to vector<8x384xf32>
    %14 = arith.negf %13 : vector<8x384xf32>
    %15 = math.exp %14 : vector<8x384xf32>
    %cst_15 = arith.constant 1.000000e+00 : f32
    %16 = vector.broadcast %cst_15 : f32 to vector<8x384xf32>
    %17 = arith.addf %16, %15 : vector<8x384xf32>
    %18 = arith.divf %16, %17 : vector<8x384xf32>
    %19 = vector.extract_strided_slice %12 {offsets = [0, 384], sizes = [8, 128], strides = [1, 1]} : vector<8x512xf32> to vector<8x128xf32>
    %20 = math.tanh %19 : vector<8x128xf32>
    %21 = vector.extract_strided_slice %18 {offsets = [0, 0], sizes = [8, 128], strides = [1, 1]} : vector<8x384xf32> to vector<8x128xf32>
    %22 = vector.extract_strided_slice %18 {offsets = [0, 128], sizes = [8, 128], strides = [1, 1]} : vector<8x384xf32> to vector<8x128xf32>
    %23 = vector.extract_strided_slice %18 {offsets = [0, 256], sizes = [8, 128], strides = [1, 1]} : vector<8x384xf32> to vector<8x128xf32>
    %24 = arith.mulf %22, %9 : vector<8x128xf32>
    %25 = arith.mulf %21, %20 : vector<8x128xf32>
    %26 = arith.addf %24, %25 : vector<8x128xf32>
    %27 = math.tanh %26 : vector<8x128xf32>
    %28 = arith.mulf %23, %27 : vector<8x128xf32>
    %c0_16 = arith.constant 0 : index
    %c0_17 = arith.constant 0 : index
    %29 = vector.load %arg10[%c0_16, %c0_17] : memref<64x128xf32, #tpu.memory_space<vmem>>, vector<8x128xf32>
    tpu.vector_store %arg10[%c0_16, %c0_17], %28 {strides = array<i32>} : memref<64x128xf32, #tpu.memory_space<vmem>>, vector<8x128xf32>,
    %c8_18 = arith.constant 8 : index
    %c0_19 = arith.constant 0 : index
    %30 = vector.load %arg9[%c8_18, %c0_19] : memref<64x512xf32, #tpu.memory_space<vmem>>, vector<8x512xf32>
    %cst_20 = arith.constant dense<0.000000e+00> : vector<8x512xf32>
    %31 = tpu.matmul %28, %7, %cst_20 {dimension_numbers = #tpu.dot_dimension_numbers<[1], [0], [0], [1], [0, 0, 1, 1], [], []>} : vector<8x128xf32>, vector<128x512xf32>, vector<8x512xf32> -> vector<8x512xf32>
    %32 = arith.addf %30, %31 : vector<8x512xf32>
    %33 = vector.extract_strided_slice %32 {offsets = [0, 0], sizes = [8, 384], strides = [1, 1]} : vector<8x512xf32> to vector<8x384xf32>
    %34 = arith.negf %33 : vector<8x384xf32>
    %35 = math.exp %34 : vector<8x384xf32>
    %cst_21 = arith.constant 1.000000e+00 : f32
    %36 = vector.broadcast %cst_21 : f32 to vector<8x384xf32>
    %37 = arith.addf %36, %35 : vector<8x384xf32>
    %38 = arith.divf %36, %37 : vector<8x384xf32>
    %39 = vector.extract_strided_slice %32 {offsets = [0, 384], sizes = [8, 128], strides = [1, 1]} : vector<8x512xf32> to vector<8x128xf32>
    %40 = math.tanh %39 : vector<8x128xf32>
    %41 = vector.extract_strided_slice %38 {offsets = [0, 0], sizes = [8, 128], strides = [1, 1]} : vector<8x384xf32> to vector<8x128xf32>
    %42 = vector.extract_strided_slice %38 {offsets = [0, 128], sizes = [8, 128], strides = [1, 1]} : vector<8x384xf32> to vector<8x128xf32>
    %43 = vector.extract_strided_slice %38 {offsets = [0, 256], sizes = [8, 128], strides = [1, 1]} : vector<8x384xf32> to vector<8x128xf32>
    %44 = arith.mulf %42, %26 : vector<8x128xf32>
    %45 = arith.mulf %41, %40 : vector<8x128xf32>
    %46 = arith.addf %44, %45 : vector<8x128xf32>
    %47 = math.tanh %46 : vector<8x128xf32>
    %48 = arith.mulf %43, %47 : vector<8x128xf32>
    %c8_22 = arith.constant 8 : index
    %c0_23 = arith.constant 0 : index
    %49 = vector.load %arg10[%c8_22, %c0_23] : memref<64x128xf32, #tpu.memory_space<vmem>>, vector<8x128xf32>
    tpu.vector_store %arg10[%c8_22, %c0_23], %48 {strides = array<i32>} : memref<64x128xf32, #tpu.memory_space<vmem>>, vector<8x128xf32>,
    %c16 = arith.constant 16 : index
    %c0_24 = arith.constant 0 : index
    %50 = vector.load %arg9[%c16, %c0_24] : memref<64x512xf32, #tpu.memory_space<vmem>>, vector<8x512xf32>
    %cst_25 = arith.constant dense<0.000000e+00> : vector<8x512xf32>
    %51 = tpu.matmul %48, %7, %cst_25 {dimension_numbers = #tpu.dot_dimension_numbers<[1], [0], [0], [1], [0, 0, 1, 1], [], []>} : vector<8x128xf32>, vector<128x512xf32>, vector<8x512xf32> -> vector<8x512xf32>
    %52 = arith.addf %50, %51 : vector<8x512xf32>
    %53 = vector.extract_strided_slice %52 {offsets = [0, 0], sizes = [8, 384], strides = [1, 1]} : vector<8x512xf32> to vector<8x384xf32>
    %54 = arith.negf %53 : vector<8x384xf32>
    %55 = math.exp %54 : vector<8x384xf32>
    %cst_26 = arith.constant 1.000000e+00 : f32
    %56 = vector.broadcast %cst_26 : f32 to vector<8x384xf32>
    %57 = arith.addf %56, %55 : vector<8x384xf32>
    %58 = arith.divf %56, %57 : vector<8x384xf32>
    %59 = vector.extract_strided_slice %52 {offsets = [0, 384], sizes = [8, 128], strides = [1, 1]} : vector<8x512xf32> to vector<8x128xf32>
    %60 = math.tanh %59 : vector<8x128xf32>
    %61 = vector.extract_strided_slice %58 {offsets = [0, 0], sizes = [8, 128], strides = [1, 1]} : vector<8x384xf32> to vector<8x128xf32>
    %62 = vector.extract_strided_slice %58 {offsets = [0, 128], sizes = [8, 128], strides = [1, 1]} : vector<8x384xf32> to vector<8x128xf32>
    %63 = vector.extract_strided_slice %58 {offsets = [0, 256], sizes = [8, 128], strides = [1, 1]} : vector<8x384xf32> to vector<8x128xf32>
    %64 = arith.mulf %62, %46 : vector<8x128xf32>
    %65 = arith.mulf %61, %60 : vector<8x128xf32>
    %66 = arith.addf %64, %65 : vector<8x128xf32>
    %67 = math.tanh %66 : vector<8x128xf32>
    %68 = arith.mulf %63, %67 : vector<8x128xf32>
    %c16_27 = arith.constant 16 : index
    %c0_28 = arith.constant 0 : index
    %69 = vector.load %arg10[%c16_27, %c0_28] : memref<64x128xf32, #tpu.memory_space<vmem>>, vector<8x128xf32>
    tpu.vector_store %arg10[%c16_27, %c0_28], %68 {strides = array<i32>} : memref<64x128xf32, #tpu.memory_space<vmem>>, vector<8x128xf32>,
    %c24 = arith.constant 24 : index
    %c0_29 = arith.constant 0 : index
    %70 = vector.load %arg9[%c24, %c0_29] : memref<64x512xf32, #tpu.memory_space<vmem>>, vector<8x512xf32>
    %cst_30 = arith.constant dense<0.000000e+00> : vector<8x512xf32>
    %71 = tpu.matmul %68, %7, %cst_30 {dimension_numbers = #tpu.dot_dimension_numbers<[1], [0], [0], [1], [0, 0, 1, 1], [], []>} : vector<8x128xf32>, vector<128x512xf32>, vector<8x512xf32> -> vector<8x512xf32>
    %72 = arith.addf %70, %71 : vector<8x512xf32>
    %73 = vector.extract_strided_slice %72 {offsets = [0, 0], sizes = [8, 384], strides = [1, 1]} : vector<8x512xf32> to vector<8x384xf32>
    %74 = arith.negf %73 : vector<8x384xf32>
    %75 = math.exp %74 : vector<8x384xf32>
    %cst_31 = arith.constant 1.000000e+00 : f32
    %76 = vector.broadcast %cst_31 : f32 to vector<8x384xf32>
    %77 = arith.addf %76, %75 : vector<8x384xf32>
    %78 = arith.divf %76, %77 : vector<8x384xf32>
    %79 = vector.extract_strided_slice %72 {offsets = [0, 384], sizes = [8, 128], strides = [1, 1]} : vector<8x512xf32> to vector<8x128xf32>
    %80 = math.tanh %79 : vector<8x128xf32>
    %81 = vector.extract_strided_slice %78 {offsets = [0, 0], sizes = [8, 128], strides = [1, 1]} : vector<8x384xf32> to vector<8x128xf32>
    %82 = vector.extract_strided_slice %78 {offsets = [0, 128], sizes = [8, 128], strides = [1, 1]} : vector<8x384xf32> to vector<8x128xf32>
    %83 = vector.extract_strided_slice %78 {offsets = [0, 256], sizes = [8, 128], strides = [1, 1]} : vector<8x384xf32> to vector<8x128xf32>
    %84 = arith.mulf %82, %66 : vector<8x128xf32>
    %85 = arith.mulf %81, %80 : vector<8x128xf32>
    %86 = arith.addf %84, %85 : vector<8x128xf32>
    %87 = math.tanh %86 : vector<8x128xf32>
    %88 = arith.mulf %83, %87 : vector<8x128xf32>
    %c24_32 = arith.constant 24 : index
    %c0_33 = arith.constant 0 : index
    %89 = vector.load %arg10[%c24_32, %c0_33] : memref<64x128xf32, #tpu.memory_space<vmem>>, vector<8x128xf32>
    tpu.vector_store %arg10[%c24_32, %c0_33], %88 {strides = array<i32>} : memref<64x128xf32, #tpu.memory_space<vmem>>, vector<8x128xf32>,
    %c32 = arith.constant 32 : index
    %c0_34 = arith.constant 0 : index
    %90 = vector.load %arg9[%c32, %c0_34] : memref<64x512xf32, #tpu.memory_space<vmem>>, vector<8x512xf32>
    %cst_35 = arith.constant dense<0.000000e+00> : vector<8x512xf32>
    %91 = tpu.matmul %88, %7, %cst_35 {dimension_numbers = #tpu.dot_dimension_numbers<[1], [0], [0], [1], [0, 0, 1, 1], [], []>} : vector<8x128xf32>, vector<128x512xf32>, vector<8x512xf32> -> vector<8x512xf32>
    %92 = arith.addf %90, %91 : vector<8x512xf32>
    %93 = vector.extract_strided_slice %92 {offsets = [0, 0], sizes = [8, 384], strides = [1, 1]} : vector<8x512xf32> to vector<8x384xf32>
    %94 = arith.negf %93 : vector<8x384xf32>
    %95 = math.exp %94 : vector<8x384xf32>
    %cst_36 = arith.constant 1.000000e+00 : f32
    %96 = vector.broadcast %cst_36 : f32 to vector<8x384xf32>
    %97 = arith.addf %96, %95 : vector<8x384xf32>
    %98 = arith.divf %96, %97 : vector<8x384xf32>
    %99 = vector.extract_strided_slice %92 {offsets = [0, 384], sizes = [8, 128], strides = [1, 1]} : vector<8x512xf32> to vector<8x128xf32>
    %100 = math.tanh %99 : vector<8x128xf32>
    %101 = vector.extract_strided_slice %98 {offsets = [0, 0], sizes = [8, 128], strides = [1, 1]} : vector<8x384xf32> to vector<8x128xf32>
    %102 = vector.extract_strided_slice %98 {offsets = [0, 128], sizes = [8, 128], strides = [1, 1]} : vector<8x384xf32> to vector<8x128xf32>
    %103 = vector.extract_strided_slice %98 {offsets = [0, 256], sizes = [8, 128], strides = [1, 1]} : vector<8x384xf32> to vector<8x128xf32>
    %104 = arith.mulf %102, %86 : vector<8x128xf32>
    %105 = arith.mulf %101, %100 : vector<8x128xf32>
    %106 = arith.addf %104, %105 : vector<8x128xf32>
    %107 = math.tanh %106 : vector<8x128xf32>
    %108 = arith.mulf %103, %107 : vector<8x128xf32>
    %c32_37 = arith.constant 32 : index
    %c0_38 = arith.constant 0 : index
    %109 = vector.load %arg10[%c32_37, %c0_38] : memref<64x128xf32, #tpu.memory_space<vmem>>, vector<8x128xf32>
    tpu.vector_store %arg10[%c32_37, %c0_38], %108 {strides = array<i32>} : memref<64x128xf32, #tpu.memory_space<vmem>>, vector<8x128xf32>,
    %c40 = arith.constant 40 : index
    %c0_39 = arith.constant 0 : index
    %110 = vector.load %arg9[%c40, %c0_39] : memref<64x512xf32, #tpu.memory_space<vmem>>, vector<8x512xf32>
    %cst_40 = arith.constant dense<0.000000e+00> : vector<8x512xf32>
    %111 = tpu.matmul %108, %7, %cst_40 {dimension_numbers = #tpu.dot_dimension_numbers<[1], [0], [0], [1], [0, 0, 1, 1], [], []>} : vector<8x128xf32>, vector<128x512xf32>, vector<8x512xf32> -> vector<8x512xf32>
    %112 = arith.addf %110, %111 : vector<8x512xf32>
    %113 = vector.extract_strided_slice %112 {offsets = [0, 0], sizes = [8, 384], strides = [1, 1]} : vector<8x512xf32> to vector<8x384xf32>
    %114 = arith.negf %113 : vector<8x384xf32>
    %115 = math.exp %114 : vector<8x384xf32>
    %cst_41 = arith.constant 1.000000e+00 : f32
    %116 = vector.broadcast %cst_41 : f32 to vector<8x384xf32>
    %117 = arith.addf %116, %115 : vector<8x384xf32>
    %118 = arith.divf %116, %117 : vector<8x384xf32>
    %119 = vector.extract_strided_slice %112 {offsets = [0, 384], sizes = [8, 128], strides = [1, 1]} : vector<8x512xf32> to vector<8x128xf32>
    %120 = math.tanh %119 : vector<8x128xf32>
    %121 = vector.extract_strided_slice %118 {offsets = [0, 0], sizes = [8, 128], strides = [1, 1]} : vector<8x384xf32> to vector<8x128xf32>
    %122 = vector.extract_strided_slice %118 {offsets = [0, 128], sizes = [8, 128], strides = [1, 1]} : vector<8x384xf32> to vector<8x128xf32>
    %123 = vector.extract_strided_slice %118 {offsets = [0, 256], sizes = [8, 128], strides = [1, 1]} : vector<8x384xf32> to vector<8x128xf32>
    %124 = arith.mulf %122, %106 : vector<8x128xf32>
    %125 = arith.mulf %121, %120 : vector<8x128xf32>
    %126 = arith.addf %124, %125 : vector<8x128xf32>
    %127 = math.tanh %126 : vector<8x128xf32>
    %128 = arith.mulf %123, %127 : vector<8x128xf32>
    %c40_42 = arith.constant 40 : index
    %c0_43 = arith.constant 0 : index
    %129 = vector.load %arg10[%c40_42, %c0_43] : memref<64x128xf32, #tpu.memory_space<vmem>>, vector<8x128xf32>
    tpu.vector_store %arg10[%c40_42, %c0_43], %128 {strides = array<i32>} : memref<64x128xf32, #tpu.memory_space<vmem>>, vector<8x128xf32>,
    %c48 = arith.constant 48 : index
    %c0_44 = arith.constant 0 : index
    %130 = vector.load %arg9[%c48, %c0_44] : memref<64x512xf32, #tpu.memory_space<vmem>>, vector<8x512xf32>
    %cst_45 = arith.constant dense<0.000000e+00> : vector<8x512xf32>
    %131 = tpu.matmul %128, %7, %cst_45 {dimension_numbers = #tpu.dot_dimension_numbers<[1], [0], [0], [1], [0, 0, 1, 1], [], []>} : vector<8x128xf32>, vector<128x512xf32>, vector<8x512xf32> -> vector<8x512xf32>
    %132 = arith.addf %130, %131 : vector<8x512xf32>
    %133 = vector.extract_strided_slice %132 {offsets = [0, 0], sizes = [8, 384], strides = [1, 1]} : vector<8x512xf32> to vector<8x384xf32>
    %134 = arith.negf %133 : vector<8x384xf32>
    %135 = math.exp %134 : vector<8x384xf32>
    %cst_46 = arith.constant 1.000000e+00 : f32
    %136 = vector.broadcast %cst_46 : f32 to vector<8x384xf32>
    %137 = arith.addf %136, %135 : vector<8x384xf32>
    %138 = arith.divf %136, %137 : vector<8x384xf32>
    %139 = vector.extract_strided_slice %132 {offsets = [0, 384], sizes = [8, 128], strides = [1, 1]} : vector<8x512xf32> to vector<8x128xf32>
    %140 = math.tanh %139 : vector<8x128xf32>
    %141 = vector.extract_strided_slice %138 {offsets = [0, 0], sizes = [8, 128], strides = [1, 1]} : vector<8x384xf32> to vector<8x128xf32>
    %142 = vector.extract_strided_slice %138 {offsets = [0, 128], sizes = [8, 128], strides = [1, 1]} : vector<8x384xf32> to vector<8x128xf32>
    %143 = vector.extract_strided_slice %138 {offsets = [0, 256], sizes = [8, 128], strides = [1, 1]} : vector<8x384xf32> to vector<8x128xf32>
    %144 = arith.mulf %142, %126 : vector<8x128xf32>
    %145 = arith.mulf %141, %140 : vector<8x128xf32>
    %146 = arith.addf %144, %145 : vector<8x128xf32>
    %147 = math.tanh %146 : vector<8x128xf32>
    %148 = arith.mulf %143, %147 : vector<8x128xf32>
    %c48_47 = arith.constant 48 : index
    %c0_48 = arith.constant 0 : index
    %149 = vector.load %arg10[%c48_47, %c0_48] : memref<64x128xf32, #tpu.memory_space<vmem>>, vector<8x128xf32>
    tpu.vector_store %arg10[%c48_47, %c0_48], %148 {strides = array<i32>} : memref<64x128xf32, #tpu.memory_space<vmem>>, vector<8x128xf32>,
    %c56 = arith.constant 56 : index
    %c0_49 = arith.constant 0 : index
    %150 = vector.load %arg9[%c56, %c0_49] : memref<64x512xf32, #tpu.memory_space<vmem>>, vector<8x512xf32>
    %cst_50 = arith.constant dense<0.000000e+00> : vector<8x512xf32>
    %151 = tpu.matmul %148, %7, %cst_50 {dimension_numbers = #tpu.dot_dimension_numbers<[1], [0], [0], [1], [0, 0, 1, 1], [], []>} : vector<8x128xf32>, vector<128x512xf32>, vector<8x512xf32> -> vector<8x512xf32>
    %152 = arith.addf %150, %151 : vector<8x512xf32>
    %153 = vector.extract_strided_slice %152 {offsets = [0, 0], sizes = [8, 384], strides = [1, 1]} : vector<8x512xf32> to vector<8x384xf32>
    %154 = arith.negf %153 : vector<8x384xf32>
    %155 = math.exp %154 : vector<8x384xf32>
    %cst_51 = arith.constant 1.000000e+00 : f32
    %156 = vector.broadcast %cst_51 : f32 to vector<8x384xf32>
    %157 = arith.addf %156, %155 : vector<8x384xf32>
    %158 = arith.divf %156, %157 : vector<8x384xf32>
    %159 = vector.extract_strided_slice %152 {offsets = [0, 384], sizes = [8, 128], strides = [1, 1]} : vector<8x512xf32> to vector<8x128xf32>
    %160 = math.tanh %159 : vector<8x128xf32>
    %161 = vector.extract_strided_slice %158 {offsets = [0, 0], sizes = [8, 128], strides = [1, 1]} : vector<8x384xf32> to vector<8x128xf32>
    %162 = vector.extract_strided_slice %158 {offsets = [0, 128], sizes = [8, 128], strides = [1, 1]} : vector<8x384xf32> to vector<8x128xf32>
    %163 = vector.extract_strided_slice %158 {offsets = [0, 256], sizes = [8, 128], strides = [1, 1]} : vector<8x384xf32> to vector<8x128xf32>
    %164 = arith.mulf %162, %146 : vector<8x128xf32>
    %165 = arith.mulf %161, %160 : vector<8x128xf32>
    %166 = arith.addf %164, %165 : vector<8x128xf32>
    %167 = math.tanh %166 : vector<8x128xf32>
    %168 = arith.mulf %163, %167 : vector<8x128xf32>
    %c56_52 = arith.constant 56 : index
    %c0_53 = arith.constant 0 : index
    %169 = vector.load %arg10[%c56_52, %c0_53] : memref<64x128xf32, #tpu.memory_space<vmem>>, vector<8x128xf32>
    tpu.vector_store %arg10[%c56_52, %c0_53], %168 {strides = array<i32>} : memref<64x128xf32, #tpu.memory_space<vmem>>, vector<8x128xf32>,
    %c0_54 = arith.constant 0 : index
    %c0_55 = arith.constant 0 : index
    %170 = vector.load %arg7[%c0_54, %c0_55] : memref<8x128xf32, #tpu.memory_space<vmem>>, vector<8x128xf32>
    tpu.vector_store %arg7[%c0_54, %c0_55], %168 {strides = array<i32>} : memref<8x128xf32, #tpu.memory_space<vmem>>, vector<8x128xf32>,
    %c0_56 = arith.constant 0 : index
    %c0_57 = arith.constant 0 : index
    %171 = vector.load %arg8[%c0_56, %c0_57] : memref<8x128xf32, #tpu.memory_space<vmem>>, vector<8x128xf32>
    tpu.vector_store %arg8[%c0_56, %c0_57], %166 {strides = array<i32>} : memref<8x128xf32, #tpu.memory_space<vmem>>, vector<8x128xf32>,
    %c0_58 = arith.constant 0 : index
    %c0_59 = arith.constant 0 : index
    %172 = vector.load %arg10[%c0_58, %c0_59] : memref<64x128xf32, #tpu.memory_space<vmem>>, vector<64x128xf32>
    %173 = tpu.iota {dimensions = array<i32: 0>} : vector<64x1xi32>
    %c8_i32 = arith.constant 8 : i32
    %c0_i32 = arith.constant 0 : i32
    %174 = arith.cmpi eq, %c8_i32, %c0_i32 : i32
    %c1_i32 = arith.constant 1 : i32
    %175 = arith.select %174, %c1_i32, %c8_i32 : i32
    %176 = vector.broadcast %175 : i32 to vector<64x1xi32>
    %177 = arith.remsi %173, %176 : vector<64x1xi32>
    %c0_i32_60 = arith.constant 0 : i32
    %178 = vector.broadcast %c0_i32_60 : i32 to vector<64x1xi32>
    %179 = arith.cmpi ne, %177, %178 : vector<64x1xi32>
    %c0_i32_61 = arith.constant 0 : i32
    %180 = vector.broadcast %c0_i32_61 : i32 to vector<64x1xi32>
    %181 = arith.cmpi slt, %177, %180 : vector<64x1xi32>
    %c0_i32_62 = arith.constant 0 : i32
    %182 = arith.cmpi slt, %175, %c0_i32_62 : i32
    %183 = vector.broadcast %182 : i1 to vector<64x1xi1>
    %184 = vector.broadcast %183 : vector<64x1xi1> to vector<64x1xi1>
    %185 = arith.xori %181, %184 : vector<64x1xi1>
    %186 = arith.andi %185, %179 : vector<64x1xi1>
    %187 = vector.broadcast %175 : i32 to vector<64x1xi32>
    %188 = arith.addi %177, %187 : vector<64x1xi32>
    %189 = arith.select %186, %188, %177 : vector<64x1xi1>, vector<64x1xi32>
    %c2_i32 = arith.constant 2 : i32
    %190 = vector.broadcast %c2_i32 : i32 to vector<64x1xi32>
    %191 = arith.cmpi slt, %189, %190 : vector<64x1xi32>
    %cst_63 = arith.constant 0.000000e+00 : f32
    %192 = vector.shape_cast %191 : vector<64x1xi1> to vector<64x1xi1>
    %193 = vector.broadcast %192 : vector<64x1xi1> to vector<64x128xi1>
    %194 = vector.broadcast %cst_63 : f32 to vector<64x128xf32>
    %195 = arith.select %193, %172, %194 : vector<64x128xi1>, vector<64x128xf32>
    %cst_64 = arith.constant dense<0.000000e+00> : vector<128xf32>
    %196 = vector.multi_reduction <add>, %195, %cst_64 [0] : vector<64x128xf32> to vector<128xf32>
    %197 = vector.shape_cast %196 : vector<128xf32> to vector<1x128xf32>
    %198 = arith.mulf %195, %195 : vector<64x128xf32>
    %cst_65 = arith.constant dense<0.000000e+00> : vector<128xf32>
    %199 = vector.multi_reduction <add>, %198, %cst_65 [0] : vector<64x128xf32> to vector<128xf32>
    %200 = vector.shape_cast %199 : vector<128xf32> to vector<1x128xf32>
    %cst_66 = arith.constant 6.250000e-02 : f32
    %201 = vector.broadcast %cst_66 : f32 to vector<1x128xf32>
    %202 = arith.mulf %197, %201 : vector<1x128xf32>
    %cst_67 = arith.constant 6.250000e-02 : f32
    %203 = vector.broadcast %cst_67 : f32 to vector<1x128xf32>
    %204 = arith.mulf %200, %203 : vector<1x128xf32>
    %205 = arith.mulf %202, %202 : vector<1x128xf32>
    %206 = arith.subf %204, %205 : vector<1x128xf32>
    %cst_68 = arith.constant 0.000000e+00 : f32
    %207 = vector.broadcast %cst_68 : f32 to vector<1x128xf32>
    %208 = arith.maximumf %206, %207 : vector<1x128xf32>
    %c1 = arith.constant 1 : index
    %c0_69 = arith.constant 0 : index
    %209 = vector.load %arg4[%c1, %c0_69] : memref<4x512xf32, #tpu.memory_space<vmem>>, vector<1x128xf32>
    %c2 = arith.constant 2 : index
    %c0_70 = arith.constant 0 : index
    %210 = vector.load %arg4[%c2, %c0_70] : memref<4x512xf32, #tpu.memory_space<vmem>>, vector<1x128xf32>
    %c3 = arith.constant 3 : index
    %c0_71 = arith.constant 0 : index
    %211 = vector.load %arg4[%c3, %c0_71] : memref<4x512xf32, #tpu.memory_space<vmem>>, vector<1x128xf32>
    %cst_72 = arith.constant 9.99999974E-6 : f32
    %212 = vector.broadcast %cst_72 : f32 to vector<1x128xf32>
    %213 = arith.addf %208, %212 : vector<1x128xf32>
    %214 = math.rsqrt %213 : vector<1x128xf32>
    %215 = arith.mulf %209, %214 : vector<1x128xf32>
    %c0_73 = arith.constant 0 : index
    %c0_74 = arith.constant 0 : index
    %216 = vector.load %arg5[%c0_73, %c0_74] : memref<128x128xf32, #tpu.memory_space<vmem>>, vector<128x128xf32>
    %217 = arith.mulf %202, %215 : vector<1x128xf32>
    %218 = arith.subf %210, %217 : vector<1x128xf32>
    %cst_75 = arith.constant dense<0.000000e+00> : vector<1x128xf32>
    %219 = tpu.matmul %218, %216, %cst_75 {dimension_numbers = #tpu.dot_dimension_numbers<[1], [0], [0], [1], [0, 0, 1, 1], [], []>} : vector<1x128xf32>, vector<128x128xf32>, vector<1x128xf32> -> vector<1x128xf32>
    %220 = arith.addf %219, %211 : vector<1x128xf32>
    %221 = vector.broadcast %215 : vector<1x128xf32> to vector<64x128xf32>
    %222 = arith.mulf %195, %221 : vector<64x128xf32>
    %cst_76 = arith.constant dense<0.000000e+00> : vector<64x128xf32>
    %223 = tpu.matmul %222, %216, %cst_76 {dimension_numbers = #tpu.dot_dimension_numbers<[1], [0], [0], [1], [0, 0, 1, 1], [], []>} : vector<64x128xf32>, vector<128x128xf32>, vector<64x128xf32> -> vector<64x128xf32>
    %224 = vector.broadcast %220 : vector<1x128xf32> to vector<64x128xf32>
    %225 = arith.addf %223, %224 : vector<64x128xf32>
    %c0_77 = arith.constant 0 : index
    %c0_78 = arith.constant 0 : index
    %226 = vector.load %arg6[%c0_77, %c0_78] : memref<64x128xf32, #tpu.memory_space<vmem>>, vector<64x128xf32>
    tpu.vector_store %arg6[%c0_77, %c0_78], %225 {strides = array<i32>} : memref<64x128xf32, #tpu.memory_space<vmem>>, vector<64x128xf32>,
    return
  }
}

</mosaic_0001>

<llo_original>
// kernel: tpu_custom_call.1
$region0: #{tpu_custom_call.1}
  #allocation0 [shape = 'u32[]', space=smem, size = 0x4, offset = 0x4, fixed_abs, tag = 'smem constant byte address 0x4 - core index']
  #allocation1 [shape = 'u32[144,128]{1,0:T(1,128)}', space=vmem, size = 0x12000, scoped, tag = 'internal scratch']
  #allocation2 [shape = 'f32[64,512]{1,0:T(8,128)}', space=vmem, size = 0x20000, scoped, tag = 'scratch operand']
  #allocation3 [shape = 'f32[64,128]{1,0:T(8,128)}', space=vmem, size = 0x8000, scoped, tag = 'scratch operand']
  %s0 = inlined_call_operand.hbm [shape: f32[64,128], index: 0, kind: input, shape index: {}]
  %s1 = inlined_call_operand.hbm [shape: f32[16,128], index: 1, kind: input, shape index: {}]
  %s2 = inlined_call_operand.hbm [shape: f32[128,512], index: 2, kind: input, shape index: {}]
  %s3 = inlined_call_operand.hbm [shape: f32[128,512], index: 3, kind: input, shape index: {}]
  %s4 = inlined_call_operand.hbm [shape: f32[4,512], index: 4, kind: input, shape index: {}]
  %s5 = inlined_call_operand.hbm [shape: f32[128,128], index: 5, kind: input, shape index: {}]
  %s6 = inlined_call_operand.hbm [shape: f32[64,128], index: 6, kind: output, shape index: {0}]
  %s7 = inlined_call_operand.hbm [shape: f32[8,128], index: 7, kind: output, shape index: {1}]
  %s8 = inlined_call_operand.hbm [shape: f32[8,128], index: 8, kind: output, shape index: {2}]
  %9 = xla_tuple %s6, %s7, %s8
  %s10 = sld [smem:[#allocation0]]
  $region74: #{tpu_custom_call.1} parent=0
    _
  %s12 = ssub.s32 1, %s10
  %s13 = scalar_select 0, %s12, %s10
  $region1: #{tpu_custom_call.1} parent=0
    #allocation4 [shape = 'u8[32768]{0}', space=vmem, size = 0x8000, scoped, tag = 'input window, operand 0, single buffered']
    #allocation5 [shape = 's32[1]{0}', space=sflag, size = 0x4, scoped, tag = 'scoped memory for tpu_custom_call.1']
    #allocation6 [shape = 's32[1]{0}', space=sflag, size = 0x4, scoped, tag = 'scoped memory for tpu_custom_call.1']
    #allocation7 [shape = 'u8[8192]{0}', space=vmem, size = 0x2000, scoped, tag = 'input window, operand 1, single buffered']
    #allocation8 [shape = 's32[1]{0}', space=sflag, size = 0x4, scoped, tag = 'scoped memory for tpu_custom_call.1']
    #allocation9 [shape = 'u8[262144]{0}', space=vmem, size = 0x40000, scoped, tag = 'input window, operand 2, single buffered']
    #allocation10 [shape = 'u8[262144]{0}', space=vmem, size = 0x40000, scoped, tag = 'input window, operand 3, single buffered']
    #allocation11 [shape = 's32[1]{0}', space=sflag, size = 0x4, scoped, tag = 'scoped memory for tpu_custom_call.1']
    #allocation12 [shape = 'u8[8192]{0}', space=vmem, size = 0x2000, scoped, tag = 'input window, operand 4, single buffered']
    #allocation13 [shape = 'u8[65536]{0}', space=vmem, size = 0x10000, scoped, tag = 'input window, operand 5, single buffered']
    #allocation14 [shape = 's32[1]{0}', space=sflag, size = 0x4, scoped, tag = 'scoped memory for tpu_custom_call.1']
    #allocation15 [shape = 'u8[32768]{0}', space=vmem, size = 0x8000, scoped, tag = 'output window, operand 0, single buffered']
    #allocation16 [shape = 'u8[4096]{0}', space=vmem, size = 0x1000, scoped, tag = 'output window, operand 1, single buffered']
    #allocation17 [shape = 's32[1]{0}', space=sflag, size = 0x4, scoped, tag = 'scoped memory for tpu_custom_call.1']
    #allocation18 [shape = 'u8[4096]{0}', space=vmem, size = 0x1000, scoped, tag = 'output window, operand 2, single buffered']
    %14 = vsyncpa [#allocation5], 0
    %15 = vsyncpa [#allocation8], 0
    %16 = vsyncpa [#allocation11], 0
    %17 = vsyncpa [#allocation14], 0
    %18 = vsyncpa [#allocation6], 0
    %19 = vsyncpa [#allocation17], 0
    // Predicated region
    $region2: #{tpu_custom_call.1} parent=1 // pred_check
      _
    $region3: #{tpu_custom_call.1} parent=1 // pred_check_branch
      %21 = sbr.rel (0) target = $region5
    $region4: #{tpu_custom_call.1} parent=1 // pred_region
      %s23 = ssub.s32 1024, 1024
      %24 = vsyncadd [#allocation5], %s23
      %s25 = sshll.u32 [#allocation4], 4
      %s26 = int_to_ptr.vmem [resolvable:$true] %s25
      %31 = dma.hbm_to_vmem [thread:$0]  %s0, 1024, %s26, [#allocation5], 128, 128, 8
    $region5: #{tpu_custom_call.1} parent=1 // pred_fallthru
      _
    // Predicated region
    $region6: #{tpu_custom_call.1} parent=1 // pred_check
      _
    $region7: #{tpu_custom_call.1} parent=1 // pred_check_branch
      %33 = sbr.rel (0) target = $region9
    $region8: #{tpu_custom_call.1} parent=1 // pred_region
      %s35 = ssub.s32 256, 256
      %36 = vsyncadd [#allocation8], %s35
      %s37 = sshll.u32 [#allocation7], 4
      %s38 = int_to_ptr.vmem [resolvable:$true] %s37
      %43 = dma.hbm_to_vmem [thread:$0]  %s1, 256, %s38, [#allocation8], 128, 128, 8
    $region9: #{tpu_custom_call.1} parent=1 // pred_fallthru
      _
    // Predicated region
    $region10: #{tpu_custom_call.1} parent=1 // pred_check
      _
    $region11: #{tpu_custom_call.1} parent=1 // pred_check_branch
      %45 = sbr.rel (0) target = $region13
    $region12: #{tpu_custom_call.1} parent=1 // pred_region
      %s47 = ssub.s32 8192, 8192
      %48 = vsyncadd [#allocation8], %s47
      %s49 = sshll.u32 [#allocation9], 4
      %s50 = int_to_ptr.vmem [resolvable:$true] %s49
      %55 = dma.hbm_to_vmem [thread:$0]  %s2, 8192, %s50, [#allocation8], 512, 512, 32
    $region13: #{tpu_custom_call.1} parent=1 // pred_fallthru
      _
    // Predicated region
    $region14: #{tpu_custom_call.1} parent=1 // pred_check
      _
    $region15: #{tpu_custom_call.1} parent=1 // pred_check_branch
      %57 = sbr.rel (0) target = $region17
    $region16: #{tpu_custom_call.1} parent=1 // pred_region
      %s59 = ssub.s32 8192, 8192
      %60 = vsyncadd [#allocation11], %s59
      %s61 = sshll.u32 [#allocation10], 4
      %s62 = int_to_ptr.vmem [resolvable:$true] %s61
      %67 = dma.hbm_to_vmem [thread:$0]  %s3, 8192, %s62, [#allocation11], 512, 512, 32
    $region17: #{tpu_custom_call.1} parent=1 // pred_fallthru
      _
    // Predicated region
    $region18: #{tpu_custom_call.1} parent=1 // pred_check
      _
    $region19: #{tpu_custom_call.1} parent=1 // pred_check_branch
      %69 = sbr.rel (0) target = $region21
    $region20: #{tpu_custom_call.1} parent=1 // pred_region
      %s71 = ssub.s32 256, 256
      %72 = vsyncadd [#allocation11], %s71
      %s74 = sshll.u32 [#allocation12], 4
      %s75 = int_to_ptr.vmem [resolvable:$true] %s74
      %77 = dma.hbm_to_vmem [thread:$0]  %s4, 256, %s75, [#allocation11]
    $region21: #{tpu_custom_call.1} parent=1 // pred_fallthru
      _
    // Predicated region
    $region22: #{tpu_custom_call.1} parent=1 // pred_check
      _
    $region23: #{tpu_custom_call.1} parent=1 // pred_check_branch
      %79 = sbr.rel (0) target = $region25
    $region24: #{tpu_custom_call.1} parent=1 // pred_region
      %s81 = ssub.s32 2048, 2048
      %82 = vsyncadd [#allocation14], %s81
      %s83 = sshll.u32 [#allocation13], 4
      %s84 = int_to_ptr.vmem [resolvable:$true] %s83
      %89 = dma.hbm_to_vmem [thread:$0]  %s5, 2048, %s84, [#allocation14], 128, 128, 8
    $region25: #{tpu_custom_call.1} parent=1 // pred_fallthru
      _
    // Predicated region
    $region26: #{tpu_custom_call.1} parent=1 // pred_check
      _
    $region27: #{tpu_custom_call.1} parent=1 // pred_check_branch
      %91 = sbr.rel (0) target = $region29
    $region28: #{tpu_custom_call.1} parent=1 // pred_region
      %92 = dma.done [#allocation5], 1024
    $region29: #{tpu_custom_call.1} parent=1 // pred_fallthru
      _
    // Predicated region
    $region30: #{tpu_custom_call.1} parent=1 // pred_check
      _
    $region31: #{tpu_custom_call.1} parent=1 // pred_check_branch
      %94 = sbr.rel (0) target = $region33
    $region32: #{tpu_custom_call.1} parent=1 // pred_region
      %95 = dma.done [#allocation8], 256
    $region33: #{tpu_custom_call.1} parent=1 // pred_fallthru
      _
    // Predicated region
    $region34: #{tpu_custom_call.1} parent=1 // pred_check
      _
    $region35: #{tpu_custom_call.1} parent=1 // pred_check_branch
      %97 = sbr.rel (0) target = $region37
    $region36: #{tpu_custom_call.1} parent=1 // pred_region
      %98 = dma.done [#allocation8], 8192
    $region37: #{tpu_custom_call.1} parent=1 // pred_fallthru
      _
    // Predicated region
    $region38: #{tpu_custom_call.1} parent=1 // pred_check
      _
    $region39: #{tpu_custom_call.1} parent=1 // pred_check_branch
      %100 = sbr.rel (0) target = $region41
    $region40: #{tpu_custom_call.1} parent=1 // pred_region
      %101 = dma.done [#allocation11], 8192
    $region41: #{tpu_custom_call.1} parent=1 // pred_fallthru
      _
    // Predicated region
    $region42: #{tpu_custom_call.1} parent=1 // pred_check
      _
    $region43: #{tpu_custom_call.1} parent=1 // pred_check_branch
      %103 = sbr.rel (0) target = $region45
    $region44: #{tpu_custom_call.1} parent=1 // pred_region
      %104 = dma.done [#allocation11], 256
    $region45: #{tpu_custom_call.1} parent=1 // pred_fallthru
      _
    // Predicated region
    $region46: #{tpu_custom_call.1} parent=1 // pred_check
      _
    $region47: #{tpu_custom_call.1} parent=1 // pred_check_branch
      %106 = sbr.rel (0) target = $region49
    $region48: #{tpu_custom_call.1} parent=1 // pred_region
      %107 = dma.done [#allocation14], 2048
    $region49: #{tpu_custom_call.1} parent=1 // pred_fallthru
      _
    %v108 = vld [vmem:[#allocation12] ss:$4 sm:$0xf]
    %v109 = vld [vmem:[#allocation4] sm:$0xff]
    %v110 = vld [vmem:[#allocation4 + $0x8] sm:$0xff]
    %v111 = vld [vmem:[#allocation4 + $0x10] sm:$0xff]
    %v112 = vld [vmem:[#allocation4 + $0x18] sm:$0xff]
    %v113 = vld [vmem:[#allocation4 + $0x20] sm:$0xff]
    %v114 = vld [vmem:[#allocation4 + $0x28] sm:$0xff]
    %v115 = vld [vmem:[#allocation4 + $0x30] sm:$0xff]
    %v116 = vld [vmem:[#allocation4 + $0x38] sm:$0xff]
    %v117 = vld [vmem:[#allocation9] sm:$0xff]
    %v118 = vld [vmem:[#allocation9 + $0x8] sm:$0xff]
    %v119 = vld [vmem:[#allocation9 + $0x10] sm:$0xff]
    %v120 = vld [vmem:[#allocation9 + $0x18] sm:$0xff]
    %v121 = vld [vmem:[#allocation9 + $0x20] sm:$0xff]
    %v122 = vld [vmem:[#allocation9 + $0x28] sm:$0xff]
    %v123 = vld [vmem:[#allocation9 + $0x30] sm:$0xff]
    %v124 = vld [vmem:[#allocation9 + $0x38] sm:$0xff]
    %v125 = vld [vmem:[#allocation9 + $0x40] sm:$0xff]
    %v126 = vld [vmem:[#allocation9 + $0x48] sm:$0xff]
    %v127 = vld [vmem:[#allocation9 + $0x50] sm:$0xff]
    %v128 = vld [vmem:[#allocation9 + $0x58] sm:$0xff]
    %v129 = vld [vmem:[#allocation9 + $0x60] sm:$0xff]
    %v130 = vld [vmem:[#allocation9 + $0x68] sm:$0xff]
    %v131 = vld [vmem:[#allocation9 + $0x70] sm:$0xff]
    %v132 = vld [vmem:[#allocation9 + $0x78] sm:$0xff]
    %v133 = vld [vmem:[#allocation9 + $0x80] sm:$0xff]
    %v134 = vld [vmem:[#allocation9 + $0x88] sm:$0xff]
    %v135 = vld [vmem:[#allocation9 + $0x90] sm:$0xff]
    %v136 = vld [vmem:[#allocation9 + $0x98] sm:$0xff]
    %v137 = vld [vmem:[#allocation9 + $0xa0] sm:$0xff]
    %v138 = vld [vmem:[#allocation9 + $0xa8] sm:$0xff]
    %v139 = vld [vmem:[#allocation9 + $0xb0] sm:$0xff]
    %v140 = vld [vmem:[#allocation9 + $0xb8] sm:$0xff]
    %v141 = vld [vmem:[#allocation9 + $0xc0] sm:$0xff]
    %v142 = vld [vmem:[#allocation9 + $0xc8] sm:$0xff]
    %v143 = vld [vmem:[#allocation9 + $0xd0] sm:$0xff]
    %v144 = vld [vmem:[#allocation9 + $0xd8] sm:$0xff]
    %v145 = vld [vmem:[#allocation9 + $0xe0] sm:$0xff]
    %v146 = vld [vmem:[#allocation9 + $0xe8] sm:$0xff]
    %v147 = vld [vmem:[#allocation9 + $0xf0] sm:$0xff]
    %v148 = vld [vmem:[#allocation9 + $0xf8] sm:$0xff]
    %v149 = vld [vmem:[#allocation9 + $0x100] sm:$0xff]
    %v150 = vld [vmem:[#allocation9 + $0x108] sm:$0xff]
    %v151 = vld [vmem:[#allocation9 + $0x110] sm:$0xff]
    %v152 = vld [vmem:[#allocation9 + $0x118] sm:$0xff]
    %v153 = vld [vmem:[#allocation9 + $0x120] sm:$0xff]
    %v154 = vld [vmem:[#allocation9 + $0x128] sm:$0xff]
    %v155 = vld [vmem:[#allocation9 + $0x130] sm:$0xff]
    %v156 = vld [vmem:[#allocation9 + $0x138] sm:$0xff]
    %v157 = vld [vmem:[#allocation9 + $0x140] sm:$0xff]
    %v158 = vld [vmem:[#allocation9 + $0x148] sm:$0xff]
    %v159 = vld [vmem:[#allocation9 + $0x150] sm:$0xff]
    %v160 = vld [vmem:[#allocation9 + $0x158] sm:$0xff]
    %v161 = vld [vmem:[#allocation9 + $0x160] sm:$0xff]
    %v162 = vld [vmem:[#allocation9 + $0x168] sm:$0xff]
    %v163 = vld [vmem:[#allocation9 + $0x170] sm:$0xff]
    %v164 = vld [vmem:[#allocation9 + $0x178] sm:$0xff]
    %v165 = vld [vmem:[#allocation9 + $0x180] sm:$0xff]
    %v166 = vld [vmem:[#allocation9 + $0x188] sm:$0xff]
    %v167 = vld [vmem:[#allocation9 + $0x190] sm:$0xff]
    %v168 = vld [vmem:[#allocation9 + $0x198] sm:$0xff]
    %v169 = vld [vmem:[#allocation9 + $0x1a0] sm:$0xff]
    %v170 = vld [vmem:[#allocation9 + $0x1a8] sm:$0xff]
    %v171 = vld [vmem:[#allocation9 + $0x1b0] sm:$0xff]
    %v172 = vld [vmem:[#allocation9 + $0x1b8] sm:$0xff]
    %v173 = vld [vmem:[#allocation9 + $0x1c0] sm:$0xff]
    %v174 = vld [vmem:[#allocation9 + $0x1c8] sm:$0xff]
    %v175 = vld [vmem:[#allocation9 + $0x1d0] sm:$0xff]
    %v176 = vld [vmem:[#allocation9 + $0x1d8] sm:$0xff]
    %v177 = vld [vmem:[#allocation9 + $0x1e0] sm:$0xff]
    %v178 = vld [vmem:[#allocation9 + $0x1e8] sm:$0xff]
    %v179 = vld [vmem:[#allocation9 + $0x1f0] sm:$0xff]
    %v180 = vld [vmem:[#allocation9 + $0x1f8] sm:$0xff]
    %v182 = vlaneseq
    %v183 = vshrl.u32 %v182, 7
    %v184 = vsub.s32 0, %v183
    %v185 = vrot.slane %v108, %v184
    %v186 = vlaneseq
    %v187 = vshrl.u32 %v186, 7
    %v188 = vsub.s32 1, %v187
    %v189 = vrot.slane %v108, %v188
    %v190 = vlaneseq
    %v191 = vshrl.u32 %v190, 7
    %v192 = vsub.s32 2, %v191
    %v193 = vrot.slane %v108, %v192
    %v194 = vlaneseq
    %v195 = vshrl.u32 %v194, 7
    %v196 = vsub.s32 3, %v195
    %v197 = vrot.slane %v108, %v196
    %202 = vmatprep.subr.mxu0 %v118
    %203 = vmatpush1.msra.mxu0 %v117
    %204 = vmatprep.subr.mxu0 %v122
    %205 = vmatpush1.msra.mxu0 %v121
    %206 = vmatprep.subr.mxu0 %v126
    %207 = vmatpush1.msra.mxu0 %v125
    %208 = vmatprep.subr.mxu0 %v130
    %209 = vmatpush1.msra.mxu0 %v129
    %210 = vmatprep.subr.mxu0 %v134
    %211 = vmatpush1.msra.mxu0 %v133
    %212 = vmatprep.subr.mxu0 %v138
    %213 = vmatpush1.msra.mxu0 %v137
    %214 = vmatprep.subr.mxu0 %v142
    %215 = vmatpush1.msra.mxu0 %v141
    %216 = vmatprep.subr.mxu0 %v146
    %217 = vmatpush1.msra.mxu0 %v145
    %218 = vmatprep.subr.mxu0 %v150
    %219 = vmatpush1.msra.mxu0 %v149
    %220 = vmatprep.subr.mxu0 %v154
    %221 = vmatpush1.msra.mxu0 %v153
    %222 = vmatprep.subr.mxu0 %v158
    %223 = vmatpush1.msra.mxu0 %v157
    %224 = vmatprep.subr.mxu0 %v162
    %225 = vmatpush1.msra.mxu0 %v161
    %226 = vmatprep.subr.mxu0 %v166
    %227 = vmatpush1.msra.mxu0 %v165
    %228 = vmatprep.subr.mxu0 %v170
    %229 = vmatpush1.msra.mxu0 %v169
    %230 = vmatprep.subr.mxu0 %v174
    %231 = vmatpush1.msra.mxu0 %v173
    %232 = vmatprep.subr.mxu0 %v178
    %233 = vmatpush1.msra.mxu0 %v177
    %234 = vmatprep.subr.mxu0 0.0
    %235 = vmatpush1.msra.mxu0 0.0
    %236 = vmatprep.subr.mxu0 0.0
    %237 = vmatpush1.msra.mxu0 0.0
    %238 = vmatprep.subr.mxu0 0.0
    %239 = vmatpush1.msra.mxu0 0.0
    %240 = vmatprep.subr.mxu0 0.0
    %241 = vmatpush1.msra.mxu0 0.0
    %242 = vmatprep.subr.mxu0 0.0
    %243 = vmatpush1.msra.mxu0 0.0
    %244 = vmatprep.subr.mxu0 0.0
    %245 = vmatpush1.msra.mxu0 0.0
    %246 = vmatprep.subr.mxu0 0.0
    %247 = vmatpush1.msra.mxu0 0.0
    %248 = vmatprep.subr.mxu0 0.0
    %249 = vmatpush1.msra.mxu0 0.0
    %250 = vmatprep.subr.mxu0 0.0
    %251 = vmatpush1.msra.mxu0 0.0
    %252 = vmatprep.subr.mxu0 0.0
    %253 = vmatpush1.msra.mxu0 0.0
    %254 = vmatprep.subr.mxu0 0.0
    %255 = vmatpush1.msra.mxu0 0.0
    %256 = vmatprep.subr.mxu0 0.0
    %257 = vmatpush1.msra.mxu0 0.0
    %258 = vmatprep.subr.mxu0 0.0
    %259 = vmatpush1.msra.mxu0 0.0
    %260 = vmatprep.subr.mxu0 0.0
    %261 = vmatpush1.msra.mxu0 0.0
    %262 = vmatprep.subr.mxu0 0.0
    %263 = vmatpush1.msra.mxu0 0.0
    %264 = vmatprep.subr.mxu0 0.0
    %265 = vmatpush1.msra.mxu0 0.0
    %266 = vmatprep.mubr.f32.mxu0 0.0
    %267 = vmatmul.mubr.f32.gmra.mrb[0].mxu0 %v109
    %v268 = vpop.f32.mrb[0].mxu0
    %v269 = vadd.f32 %v185, %v268
    %v270 = vpop.f32.mrb[0].mxu0
    %v271 = vadd.f32 %v189, %v270
    %272 = vmatprep.mubr.f32.mxu0 0.0
    %273 = vmatmul.mubr.f32.gmra.mrb[0].mxu0 %v110
    %v274 = vpop.f32.mrb[0].mxu0
    %v275 = vadd.f32 %v185, %v274
    %v276 = vpop.f32.mrb[0].mxu0
    %v277 = vadd.f32 %v189, %v276
    %278 = vmatprep.mubr.f32.mxu0 0.0
    %279 = vmatmul.mubr.f32.gmra.mrb[0].mxu0 %v111
    %v280 = vpop.f32.mrb[0].mxu0
    %v281 = vadd.f32 %v185, %v280
    %v282 = vpop.f32.mrb[0].mxu0
    %v283 = vadd.f32 %v189, %v282
    %284 = vmatprep.mubr.f32.mxu0 0.0
    %285 = vmatmul.mubr.f32.gmra.mrb[0].mxu0 %v112
    %v286 = vpop.f32.mrb[0].mxu0
    %v287 = vadd.f32 %v185, %v286
    %v288 = vpop.f32.mrb[0].mxu0
    %v289 = vadd.f32 %v189, %v288
    %290 = vmatprep.mubr.f32.mxu0 0.0
    %291 = vmatmul.mubr.f32.gmra.mrb[0].mxu0 %v113
    %v292 = vpop.f32.mrb[0].mxu0
    %v293 = vadd.f32 %v185, %v292
    %v294 = vpop.f32.mrb[0].mxu0
    %v295 = vadd.f32 %v189, %v294
    %296 = vmatprep.mubr.f32.mxu0 0.0
    %297 = vmatmul.mubr.f32.gmra.mrb[0].mxu0 %v114
    %v298 = vpop.f32.mrb[0].mxu0
    %v299 = vadd.f32 %v185, %v298
    %v300 = vpop.f32.mrb[0].mxu0
    %v301 = vadd.f32 %v189, %v300
    %302 = vmatprep.mubr.f32.mxu0 0.0
    %303 = vmatmul.mubr.f32.gmra.mrb[0].mxu0 %v115
    %v304 = vpop.f32.mrb[0].mxu0
    %v305 = vadd.f32 %v185, %v304
    %v306 = vpop.f32.mrb[0].mxu0
    %v307 = vadd.f32 %v189, %v306
    %308 = vmatprep.mubr.f32.mxu0 0.0
    %309 = vmatmul.mubr.f32.gmra.mrb[0].mxu0 %v116
    %v310 = vpop.f32.mrb[0].mxu0
    %v311 = vadd.f32 %v185, %v310
    %v312 = vpop.f32.mrb[0].mxu0
    %v313 = vadd.f32 %v189, %v312
    %314 = vdwg.mxu0
    %315 = vmatprep.subr.mxu0 %v120
    %316 = vmatpush1.msra.mxu0 %v119
    %317 = vmatprep.subr.mxu0 %v124
    %318 = vmatpush1.msra.mxu0 %v123
    %319 = vmatprep.subr.mxu0 %v128
    %320 = vmatpush1.msra.mxu0 %v127
    %321 = vmatprep.subr.mxu0 %v132
    %322 = vmatpush1.msra.mxu0 %v131
    %323 = vmatprep.subr.mxu0 %v136
    %324 = vmatpush1.msra.mxu0 %v135
    %325 = vmatprep.subr.mxu0 %v140
    %326 = vmatpush1.msra.mxu0 %v139
    %327 = vmatprep.subr.mxu0 %v144
    %328 = vmatpush1.msra.mxu0 %v143
    %329 = vmatprep.subr.mxu0 %v148
    %330 = vmatpush1.msra.mxu0 %v147
    %331 = vmatprep.subr.mxu0 %v152
    %332 = vmatpush1.msra.mxu0 %v151
    %333 = vmatprep.subr.mxu0 %v156
    %334 = vmatpush1.msra.mxu0 %v155
    %335 = vmatprep.subr.mxu0 %v160
    %336 = vmatpush1.msra.mxu0 %v159
    %337 = vmatprep.subr.mxu0 %v164
    %338 = vmatpush1.msra.mxu0 %v163
    %339 = vmatprep.subr.mxu0 %v168
    %340 = vmatpush1.msra.mxu0 %v167
    %341 = vmatprep.subr.mxu0 %v172
    %342 = vmatpush1.msra.mxu0 %v171
    %343 = vmatprep.subr.mxu0 %v176
    %344 = vmatpush1.msra.mxu0 %v175
    %345 = vmatprep.subr.mxu0 %v180
    %346 = vmatpush1.msra.mxu0 %v179
    %347 = vmatprep.subr.mxu0 0.0
    %348 = vmatpush1.msra.mxu0 0.0
    %349 = vmatprep.subr.mxu0 0.0
    %350 = vmatpush1.msra.mxu0 0.0
    %351 = vmatprep.subr.mxu0 0.0
    %352 = vmatpush1.msra.mxu0 0.0
    %353 = vmatprep.subr.mxu0 0.0
    %354 = vmatpush1.msra.mxu0 0.0
    %355 = vmatprep.subr.mxu0 0.0
    %356 = vmatpush1.msra.mxu0 0.0
    %357 = vmatprep.subr.mxu0 0.0
    %358 = vmatpush1.msra.mxu0 0.0
    %359 = vmatprep.subr.mxu0 0.0
    %360 = vmatpush1.msra.mxu0 0.0
    %361 = vmatprep.subr.mxu0 0.0
    %362 = vmatpush1.msra.mxu0 0.0
    %363 = vmatprep.subr.mxu0 0.0
    %364 = vmatpush1.msra.mxu0 0.0
    %365 = vmatprep.subr.mxu0 0.0
    %366 = vmatpush1.msra.mxu0 0.0
    %367 = vmatprep.subr.mxu0 0.0
    %368 = vmatpush1.msra.mxu0 0.0
    %369 = vmatprep.subr.mxu0 0.0
    %370 = vmatpush1.msra.mxu0 0.0
    %371 = vmatprep.subr.mxu0 0.0
    %372 = vmatpush1.msra.mxu0 0.0
    %373 = vmatprep.subr.mxu0 0.0
    %374 = vmatpush1.msra.mxu0 0.0
    %375 = vmatprep.subr.mxu0 0.0
    %376 = vmatpush1.msra.mxu0 0.0
    %377 = vmatprep.subr.mxu0 0.0
    %378 = vmatpush1.msra.mxu0 0.0
    %379 = vmatprep.mubr.f32.mxu0 0.0
    %380 = vmatmul.mubr.f32.gmra.mrb[0].mxu0 %v109
    %v381 = vpop.f32.mrb[0].mxu0
    %v382 = vadd.f32 %v193, %v381
    %v383 = vpop.f32.mrb[0].mxu0
    %v384 = vadd.f32 %v197, %v383
    %385 = vmatprep.mubr.f32.mxu0 0.0
    %386 = vmatmul.mubr.f32.gmra.mrb[0].mxu0 %v110
    %v387 = vpop.f32.mrb[0].mxu0
    %v388 = vadd.f32 %v193, %v387
    %v389 = vpop.f32.mrb[0].mxu0
    %v390 = vadd.f32 %v197, %v389
    %391 = vmatprep.mubr.f32.mxu0 0.0
    %392 = vmatmul.mubr.f32.gmra.mrb[0].mxu0 %v111
    %v393 = vpop.f32.mrb[0].mxu0
    %v394 = vadd.f32 %v193, %v393
    %v395 = vpop.f32.mrb[0].mxu0
    %v396 = vadd.f32 %v197, %v395
    %397 = vmatprep.mubr.f32.mxu0 0.0
    %398 = vmatmul.mubr.f32.gmra.mrb[0].mxu0 %v112
    %v399 = vpop.f32.mrb[0].mxu0
    %v400 = vadd.f32 %v193, %v399
    %v401 = vpop.f32.mrb[0].mxu0
    %v402 = vadd.f32 %v197, %v401
    %403 = vmatprep.mubr.f32.mxu0 0.0
    %404 = vmatmul.mubr.f32.gmra.mrb[0].mxu0 %v113
    %v405 = vpop.f32.mrb[0].mxu0
    %v406 = vadd.f32 %v193, %v405
    %v407 = vpop.f32.mrb[0].mxu0
    %v408 = vadd.f32 %v197, %v407
    %409 = vmatprep.mubr.f32.mxu0 0.0
    %410 = vmatmul.mubr.f32.gmra.mrb[0].mxu0 %v114
    %v411 = vpop.f32.mrb[0].mxu0
    %v412 = vadd.f32 %v193, %v411
    %v413 = vpop.f32.mrb[0].mxu0
    %v414 = vadd.f32 %v197, %v413
    %415 = vmatprep.mubr.f32.mxu0 0.0
    %416 = vmatmul.mubr.f32.gmra.mrb[0].mxu0 %v115
    %v417 = vpop.f32.mrb[0].mxu0
    %v418 = vadd.f32 %v193, %v417
    %v419 = vpop.f32.mrb[0].mxu0
    %v420 = vadd.f32 %v197, %v419
    %421 = vmatprep.mubr.f32.mxu0 0.0
    %422 = vmatmul.mubr.f32.gmra.mrb[0].mxu0 %v116
    %v423 = vpop.f32.mrb[0].mxu0
    %v424 = vadd.f32 %v193, %v423
    %v425 = vpop.f32.mrb[0].mxu0
    %v426 = vadd.f32 %v197, %v425
    %427 = vdwg.mxu0
    %428 = vst [vmem:[#allocation2] sm:$0xff] %v269
    %429 = vst [vmem:[#allocation2 + $0x8] sm:$0xff] %v271
    %430 = vst [vmem:[#allocation2 + $0x10] sm:$0xff] %v382
    %431 = vst [vmem:[#allocation2 + $0x18] sm:$0xff] %v384
    %432 = vst [vmem:[#allocation2 + $0x20] sm:$0xff] %v275
    %433 = vst [vmem:[#allocation2 + $0x28] sm:$0xff] %v277
    %434 = vst [vmem:[#allocation2 + $0x30] sm:$0xff] %v388
    %435 = vst [vmem:[#allocation2 + $0x38] sm:$0xff] %v390
    %436 = vst [vmem:[#allocation2 + $0x40] sm:$0xff] %v281
    %437 = vst [vmem:[#allocation2 + $0x48] sm:$0xff] %v283
    %438 = vst [vmem:[#allocation2 + $0x50] sm:$0xff] %v394
    %439 = vst [vmem:[#allocation2 + $0x58] sm:$0xff] %v396
    %440 = vst [vmem:[#allocation2 + $0x60] sm:$0xff] %v287
    %441 = vst [vmem:[#allocation2 + $0x68] sm:$0xff] %v289
    %442 = vst [vmem:[#allocation2 + $0x70] sm:$0xff] %v400
    %443 = vst [vmem:[#allocation2 + $0x78] sm:$0xff] %v402
    %444 = vst [vmem:[#allocation2 + $0x80] sm:$0xff] %v293
    %445 = vst [vmem:[#allocation2 + $0x88] sm:$0xff] %v295
    %446 = vst [vmem:[#allocation2 + $0x90] sm:$0xff] %v406
    %447 = vst [vmem:[#allocation2 + $0x98] sm:$0xff] %v408
    %448 = vst [vmem:[#allocation2 + $0xa0] sm:$0xff] %v299
    %449 = vst [vmem:[#allocation2 + $0xa8] sm:$0xff] %v301
    %450 = vst [vmem:[#allocation2 + $0xb0] sm:$0xff] %v412
    %451 = vst [vmem:[#allocation2 + $0xb8] sm:$0xff] %v414
    %452 = vst [vmem:[#allocation2 + $0xc0] sm:$0xff] %v305
    %453 = vst [vmem:[#allocation2 + $0xc8] sm:$0xff] %v307
    %454 = vst [vmem:[#allocation2 + $0xd0] sm:$0xff] %v418
    %455 = vst [vmem:[#allocation2 + $0xd8] sm:$0xff] %v420
    %456 = vst [vmem:[#allocation2 + $0xe0] sm:$0xff] %v311
    %457 = vst [vmem:[#allocation2 + $0xe8] sm:$0xff] %v313
    %458 = vst [vmem:[#allocation2 + $0xf0] sm:$0xff] %v424
    %459 = vst [vmem:[#allocation2 + $0xf8] sm:$0xff] %v426
    %v460 = vld [vmem:[#allocation10] sm:$0xff]
    %v461 = vld [vmem:[#allocation10 + $0x8] sm:$0xff]
    %v462 = vld [vmem:[#allocation10 + $0x10] sm:$0xff]
    %v463 = vld [vmem:[#allocation10 + $0x18] sm:$0xff]
    %v464 = vld [vmem:[#allocation10 + $0x20] sm:$0xff]
    %v465 = vld [vmem:[#allocation10 + $0x28] sm:$0xff]
    %v466 = vld [vmem:[#allocation10 + $0x30] sm:$0xff]
    %v467 = vld [vmem:[#allocation10 + $0x38] sm:$0xff]
    %v468 = vld [vmem:[#allocation10 + $0x40] sm:$0xff]
    %v469 = vld [vmem:[#allocation10 + $0x48] sm:$0xff]
    %v470 = vld [vmem:[#allocation10 + $0x50] sm:$0xff]
    %v471 = vld [vmem:[#allocation10 + $0x58] sm:$0xff]
    %v472 = vld [vmem:[#allocation10 + $0x60] sm:$0xff]
    %v473 = vld [vmem:[#allocation10 + $0x68] sm:$0xff]
    %v474 = vld [vmem:[#allocation10 + $0x70] sm:$0xff]
    %v475 = vld [vmem:[#allocation10 + $0x78] sm:$0xff]
    %v476 = vld [vmem:[#allocation10 + $0x80] sm:$0xff]
    %v477 = vld [vmem:[#allocation10 + $0x88] sm:$0xff]
    %v478 = vld [vmem:[#allocation10 + $0x90] sm:$0xff]
    %v479 = vld [vmem:[#allocation10 + $0x98] sm:$0xff]
    %v480 = vld [vmem:[#allocation10 + $0xa0] sm:$0xff]
    %v481 = vld [vmem:[#allocation10 + $0xa8] sm:$0xff]
    %v482 = vld [vmem:[#allocation10 + $0xb0] sm:$0xff]
    %v483 = vld [vmem:[#allocation10 + $0xb8] sm:$0xff]
    %v484 = vld [vmem:[#allocation10 + $0xc0] sm:$0xff]
    %v485 = vld [vmem:[#allocation10 + $0xc8] sm:$0xff]
    %v486 = vld [vmem:[#allocation10 + $0xd0] sm:$0xff]
    %v487 = vld [vmem:[#allocation10 + $0xd8] sm:$0xff]
    %v488 = vld [vmem:[#allocation10 + $0xe0] sm:$0xff]
    %v489 = vld [vmem:[#allocation10 + $0xe8] sm:$0xff]
    %v490 = vld [vmem:[#allocation10 + $0xf0] sm:$0xff]
    %v491 = vld [vmem:[#allocation10 + $0xf8] sm:$0xff]
    %v492 = vld [vmem:[#allocation10 + $0x100] sm:$0xff]
    %v493 = vld [vmem:[#allocation10 + $0x108] sm:$0xff]
    %v494 = vld [vmem:[#allocation10 + $0x110] sm:$0xff]
    %v495 = vld [vmem:[#allocation10 + $0x118] sm:$0xff]
    %v496 = vld [vmem:[#allocation10 + $0x120] sm:$0xff]
    %v497 = vld [vmem:[#allocation10 + $0x128] sm:$0xff]
    %v498 = vld [vmem:[#allocation10 + $0x130] sm:$0xff]
    %v499 = vld [vmem:[#allocation10 + $0x138] sm:$0xff]
    %v500 = vld [vmem:[#allocation10 + $0x140] sm:$0xff]
    %v501 = vld [vmem:[#allocation10 + $0x148] sm:$0xff]
    %v502 = vld [vmem:[#allocation10 + $0x150] sm:$0xff]
    %v503 = vld [vmem:[#allocation10 + $0x158] sm:$0xff]
    %v504 = vld [vmem:[#allocation10 + $0x160] sm:$0xff]
    %v505 = vld [vmem:[#allocation10 + $0x168] sm:$0xff]
    %v506 = vld [vmem:[#allocation10 + $0x170] sm:$0xff]
    %v507 = vld [vmem:[#allocation10 + $0x178] sm:$0xff]
    %v508 = vld [vmem:[#allocation10 + $0x180] sm:$0xff]
    %v509 = vld [vmem:[#allocation10 + $0x188] sm:$0xff]
    %v510 = vld [vmem:[#allocation10 + $0x190] sm:$0xff]
    %v511 = vld [vmem:[#allocation10 + $0x198] sm:$0xff]
    %v512 = vld [vmem:[#allocation10 + $0x1a0] sm:$0xff]
    %v513 = vld [vmem:[#allocation10 + $0x1a8] sm:$0xff]
    %v514 = vld [vmem:[#allocation10 + $0x1b0] sm:$0xff]
    %v515 = vld [vmem:[#allocation10 + $0x1b8] sm:$0xff]
    %v516 = vld [vmem:[#allocation10 + $0x1c0] sm:$0xff]
    %v517 = vld [vmem:[#allocation10 + $0x1c8] sm:$0xff]
    %v518 = vld [vmem:[#allocation10 + $0x1d0] sm:$0xff]
    %v519 = vld [vmem:[#allocation10 + $0x1d8] sm:$0xff]
    %v520 = vld [vmem:[#allocation10 + $0x1e0] sm:$0xff]
    %v521 = vld [vmem:[#allocation10 + $0x1e8] sm:$0xff]
    %v522 = vld [vmem:[#allocation10 + $0x1f0] sm:$0xff]
    %v523 = vld [vmem:[#allocation10 + $0x1f8] sm:$0xff]
    %v524 = vld [vmem:[#allocation7] sm:$0xff]
    %v525 = vld [vmem:[#allocation7 + $0x8] sm:$0xff]
    %v526 = vld [vmem:[#allocation2] sm:$0xff]
    %v527 = vld [vmem:[#allocation2 + $0x8] sm:$0xff]
    %v528 = vld [vmem:[#allocation2 + $0x10] sm:$0xff]
    %v529 = vld [vmem:[#allocation2 + $0x18] sm:$0xff]
    %530 = vmatprep.subr.mxu0 %v461
    %531 = vmatpush1.msra.mxu0 %v460
    %532 = vmatprep.subr.mxu0 %v465
    %533 = vmatpush1.msra.mxu0 %v464
    %534 = vmatprep.subr.mxu0 %v469
    %535 = vmatpush1.msra.mxu0 %v468
    %536 = vmatprep.subr.mxu0 %v473
    %537 = vmatpush1.msra.mxu0 %v472
    %538 = vmatprep.subr.mxu0 %v477
    %539 = vmatpush1.msra.mxu0 %v476
    %540 = vmatprep.subr.mxu0 %v481
    %541 = vmatpush1.msra.mxu0 %v480
    %542 = vmatprep.subr.mxu0 %v485
    %543 = vmatpush1.msra.mxu0 %v484
    %544 = vmatprep.subr.mxu0 %v489
    %545 = vmatpush1.msra.mxu0 %v488
    %546 = vmatprep.subr.mxu0 %v493
    %547 = vmatpush1.msra.mxu0 %v492
    %548 = vmatprep.subr.mxu0 %v497
    %549 = vmatpush1.msra.mxu0 %v496
    %550 = vmatprep.subr.mxu0 %v501
    %551 = vmatpush1.msra.mxu0 %v500
    %552 = vmatprep.subr.mxu0 %v505
    %553 = vmatpush1.msra.mxu0 %v504
    %554 = vmatprep.subr.mxu0 %v509
    %555 = vmatpush1.msra.mxu0 %v508
    %556 = vmatprep.subr.mxu0 %v513
    %557 = vmatpush1.msra.mxu0 %v512
    %558 = vmatprep.subr.mxu0 %v517
    %559 = vmatpush1.msra.mxu0 %v516
    %560 = vmatprep.subr.mxu0 %v521
    %561 = vmatpush1.msra.mxu0 %v520
    %562 = vmatprep.subr.mxu0 0.0
    %563 = vmatpush1.msra.mxu0 0.0
    %564 = vmatprep.subr.mxu0 0.0
    %565 = vmatpush1.msra.mxu0 0.0
    %566 = vmatprep.subr.mxu0 0.0
    %567 = vmatpush1.msra.mxu0 0.0
    %568 = vmatprep.subr.mxu0 0.0
    %569 = vmatpush1.msra.mxu0 0.0
    %570 = vmatprep.subr.mxu0 0.0
    %571 = vmatpush1.msra.mxu0 0.0
    %572 = vmatprep.subr.mxu0 0.0
    %573 = vmatpush1.msra.mxu0 0.0
    %574 = vmatprep.subr.mxu0 0.0
    %575 = vmatpush1.msra.mxu0 0.0
    %576 = vmatprep.subr.mxu0 0.0
    %577 = vmatpush1.msra.mxu0 0.0
    %578 = vmatprep.subr.mxu0 0.0
    %579 = vmatpush1.msra.mxu0 0.0
    %580 = vmatprep.subr.mxu0 0.0
    %581 = vmatpush1.msra.mxu0 0.0
    %582 = vmatprep.subr.mxu0 0.0
    %583 = vmatpush1.msra.mxu0 0.0
    %584 = vmatprep.subr.mxu0 0.0
    %585 = vmatpush1.msra.mxu0 0.0
    %586 = vmatprep.subr.mxu0 0.0
    %587 = vmatpush1.msra.mxu0 0.0
    %588 = vmatprep.subr.mxu0 0.0
    %589 = vmatpush1.msra.mxu0 0.0
    %590 = vmatprep.subr.mxu0 0.0
    %591 = vmatpush1.msra.mxu0 0.0
    %592 = vmatprep.subr.mxu0 0.0
    %593 = vmatpush1.msra.mxu0 0.0
    %594 = vmatprep.mubr.f32.mxu0 0.0
    %595 = vmatmul.mubr.f32.gmra.mrb[0].mxu0 %v524
    %v596 = vpop.f32.mrb[0].mxu0
    %v597 = vadd.f32 0.0, %v596
    %v598 = vpop.f32.mrb[0].mxu0
    %v599 = vadd.f32 0.0, %v598
    %600 = vdwg.mxu0
    %601 = vmatprep.subr.mxu0 %v463
    %602 = vmatpush1.msra.mxu0 %v462
    %603 = vmatprep.subr.mxu0 %v467
    %604 = vmatpush1.msra.mxu0 %v466
    %605 = vmatprep.subr.mxu0 %v471
    %606 = vmatpush1.msra.mxu0 %v470
    %607 = vmatprep.subr.mxu0 %v475
    %608 = vmatpush1.msra.mxu0 %v474
    %609 = vmatprep.subr.mxu0 %v479
    %610 = vmatpush1.msra.mxu0 %v478
    %611 = vmatprep.subr.mxu0 %v483
    %612 = vmatpush1.msra.mxu0 %v482
    %613 = vmatprep.subr.mxu0 %v487
    %614 = vmatpush1.msra.mxu0 %v486
    %615 = vmatprep.subr.mxu0 %v491
    %616 = vmatpush1.msra.mxu0 %v490
    %617 = vmatprep.subr.mxu0 %v495
    %618 = vmatpush1.msra.mxu0 %v494
    %619 = vmatprep.subr.mxu0 %v499
    %620 = vmatpush1.msra.mxu0 %v498
    %621 = vmatprep.subr.mxu0 %v503
    %622 = vmatpush1.msra.mxu0 %v502
    %623 = vmatprep.subr.mxu0 %v507
    %624 = vmatpush1.msra.mxu0 %v506
    %625 = vmatprep.subr.mxu0 %v511
    %626 = vmatpush1.msra.mxu0 %v510
    %627 = vmatprep.subr.mxu0 %v515
    %628 = vmatpush1.msra.mxu0 %v514
    %629 = vmatprep.subr.mxu0 %v519
    %630 = vmatpush1.msra.mxu0 %v518
    %631 = vmatprep.subr.mxu0 %v523
    %632 = vmatpush1.msra.mxu0 %v522
    %633 = vmatprep.subr.mxu0 0.0
    %634 = vmatpush1.msra.mxu0 0.0
    %635 = vmatprep.subr.mxu0 0.0
    %636 = vmatpush1.msra.mxu0 0.0
    %637 = vmatprep.subr.mxu0 0.0
    %638 = vmatpush1.msra.mxu0 0.0
    %639 = vmatprep.subr.mxu0 0.0
    %640 = vmatpush1.msra.mxu0 0.0
    %641 = vmatprep.subr.mxu0 0.0
    %642 = vmatpush1.msra.mxu0 0.0
    %643 = vmatprep.subr.mxu0 0.0
    %644 = vmatpush1.msra.mxu0 0.0
    %645 = vmatprep.subr.mxu0 0.0
    %646 = vmatpush1.msra.mxu0 0.0
    %647 = vmatprep.subr.mxu0 0.0
    %648 = vmatpush1.msra.mxu0 0.0
    %649 = vmatprep.subr.mxu0 0.0
    %650 = vmatpush1.msra.mxu0 0.0
    %651 = vmatprep.subr.mxu0 0.0
    %652 = vmatpush1.msra.mxu0 0.0
    %653 = vmatprep.subr.mxu0 0.0
    %654 = vmatpush1.msra.mxu0 0.0
    %655 = vmatprep.subr.mxu0 0.0
    %656 = vmatpush1.msra.mxu0 0.0
    %657 = vmatprep.subr.mxu0 0.0
    %658 = vmatpush1.msra.mxu0 0.0
    %659 = vmatprep.subr.mxu0 0.0
    %660 = vmatpush1.msra.mxu0 0.0
    %661 = vmatprep.subr.mxu0 0.0
    %662 = vmatpush1.msra.mxu0 0.0
    %663 = vmatprep.subr.mxu0 0.0
    %664 = vmatpush1.msra.mxu0 0.0
    %665 = vmatprep.mubr.f32.mxu0 0.0
    %666 = vmatmul.mubr.f32.gmra.mrb[0].mxu0 %v524
    %v667 = vpop.f32.mrb[0].mxu0
    %v668 = vadd.f32 0.0, %v667
    %v669 = vpop.f32.mrb[0].mxu0
    %v670 = vadd.f32 0.0, %v669
    %671 = vdwg.mxu0
    %v672 = vadd.f32 %v526, %v597
    %v673 = vadd.f32 %v527, %v599
    %v674 = vadd.f32 %v528, %v668
    %v675 = vadd.f32 %v529, %v670
    %v676 = vxor.u32 %v672, 2147483648
    %v677 = vxor.u32 %v673, 2147483648
    %v678 = vxor.u32 %v674, 2147483648
    %v679 = vmul.f32 %v676, 1.442695
    %v680 = vpow.pop %v679
    %v681 = vmul.f32 %v677, 1.442695
    %v682 = vpow.pop %v681
    %v683 = vmul.f32 %v678, 1.442695
    %v684 = vpow.pop %v683
    %v685 = vadd.f32 %v680, 1.0
    %v686 = vadd.f32 %v682, 1.0
    %v687 = vadd.f32 %v684, 1.0
    %v688 = vrcp.pop %v685
    %v689 = vmul.f32 1.0, %v688
    %v690 = vrcp.pop %v686
    %v691 = vmul.f32 1.0, %v690
    %v692 = vrcp.pop %v687
    %v693 = vmul.f32 1.0, %v692
    %v694 = vtanh.pop %v675
    %v695 = vmul.f32 %v691, %v525
    %v696 = vmul.f32 %v689, %v694
    %v697 = vadd.f32 %v695, %v696
    %v698 = vtanh.pop %v697
    %v699 = vmul.f32 %v693, %v698
    %700 = vst [vmem:[#allocation3] sm:$0xff] %v699
    %v701 = vld [vmem:[#allocation2 + $0x20] sm:$0xff]
    %v702 = vld [vmem:[#allocation2 + $0x28] sm:$0xff]
    %v703 = vld [vmem:[#allocation2 + $0x30] sm:$0xff]
    %v704 = vld [vmem:[#allocation2 + $0x38] sm:$0xff]
    %705 = vmatprep.subr.mxu0 %v461
    %706 = vmatpush1.msra.mxu0 %v460
    %707 = vmatprep.subr.mxu0 %v465
    %708 = vmatpush1.msra.mxu0 %v464
    %709 = vmatprep.subr.mxu0 %v469
    %710 = vmatpush1.msra.mxu0 %v468
    %711 = vmatprep.subr.mxu0 %v473
    %712 = vmatpush1.msra.mxu0 %v472
    %713 = vmatprep.subr.mxu0 %v477
    %714 = vmatpush1.msra.mxu0 %v476
    %715 = vmatprep.subr.mxu0 %v481
    %716 = vmatpush1.msra.mxu0 %v480
    %717 = vmatprep.subr.mxu0 %v485
    %718 = vmatpush1.msra.mxu0 %v484
    %719 = vmatprep.subr.mxu0 %v489
    %720 = vmatpush1.msra.mxu0 %v488
    %721 = vmatprep.subr.mxu0 %v493
    %722 = vmatpush1.msra.mxu0 %v492
    %723 = vmatprep.subr.mxu0 %v497
    %724 = vmatpush1.msra.mxu0 %v496
    %725 = vmatprep.subr.mxu0 %v501
    %726 = vmatpush1.msra.mxu0 %v500
    %727 = vmatprep.subr.mxu0 %v505
    %728 = vmatpush1.msra.mxu0 %v504
    %729 = vmatprep.subr.mxu0 %v509
    %730 = vmatpush1.msra.mxu0 %v508
    %731 = vmatprep.subr.mxu0 %v513
    %732 = vmatpush1.msra.mxu0 %v512
    %733 = vmatprep.subr.mxu0 %v517
    %734 = vmatpush1.msra.mxu0 %v516
    %735 = vmatprep.subr.mxu0 %v521
    %736 = vmatpush1.msra.mxu0 %v520
    %737 = vmatprep.subr.mxu0 0.0
    %738 = vmatpush1.msra.mxu0 0.0
    %739 = vmatprep.subr.mxu0 0.0
    %740 = vmatpush1.msra.mxu0 0.0
    %741 = vmatprep.subr.mxu0 0.0
    %742 = vmatpush1.msra.mxu0 0.0
    %743 = vmatprep.subr.mxu0 0.0
    %744 = vmatpush1.msra.mxu0 0.0
    %745 = vmatprep.subr.mxu0 0.0
    %746 = vmatpush1.msra.mxu0 0.0
    %747 = vmatprep.subr.mxu0 0.0
    %748 = vmatpush1.msra.mxu0 0.0
    %749 = vmatprep.subr.mxu0 0.0
    %750 = vmatpush1.msra.mxu0 0.0
    %751 = vmatprep.subr.mxu0 0.0
    %752 = vmatpush1.msra.mxu0 0.0
    %753 = vmatprep.subr.mxu0 0.0
    %754 = vmatpush1.msra.mxu0 0.0
    %755 = vmatprep.subr.mxu0 0.0
    %756 = vmatpush1.msra.mxu0 0.0
    %757 = vmatprep.subr.mxu0 0.0
    %758 = vmatpush1.msra.mxu0 0.0
    %759 = vmatprep.subr.mxu0 0.0
    %760 = vmatpush1.msra.mxu0 0.0
    %761 = vmatprep.subr.mxu0 0.0
    %762 = vmatpush1.msra.mxu0 0.0
    %763 = vmatprep.subr.mxu0 0.0
    %764 = vmatpush1.msra.mxu0 0.0
    %765 = vmatprep.subr.mxu0 0.0
    %766 = vmatpush1.msra.mxu0 0.0
    %767 = vmatprep.subr.mxu0 0.0
    %768 = vmatpush1.msra.mxu0 0.0
    %769 = vmatprep.mubr.f32.mxu0 0.0
    %770 = vmatmul.mubr.f32.gmra.mrb[0].mxu0 %v699
    %v771 = vpop.f32.mrb[0].mxu0
    %v772 = vadd.f32 0.0, %v771
    %v773 = vpop.f32.mrb[0].mxu0
    %v774 = vadd.f32 0.0, %v773
    %775 = vdwg.mxu0
    %776 = vmatprep.subr.mxu0 %v463
    %777 = vmatpush1.msra.mxu0 %v462
    %778 = vmatprep.subr.mxu0 %v467
    %779 = vmatpush1.msra.mxu0 %v466
    %780 = vmatprep.subr.mxu0 %v471
    %781 = vmatpush1.msra.mxu0 %v470
    %782 = vmatprep.subr.mxu0 %v475
    %783 = vmatpush1.msra.mxu0 %v474
    %784 = vmatprep.subr.mxu0 %v479
    %785 = vmatpush1.msra.mxu0 %v478
    %786 = vmatprep.subr.mxu0 %v483
    %787 = vmatpush1.msra.mxu0 %v482
    %788 = vmatprep.subr.mxu0 %v487
    %789 = vmatpush1.msra.mxu0 %v486
    %790 = vmatprep.subr.mxu0 %v491
    %791 = vmatpush1.msra.mxu0 %v490
    %792 = vmatprep.subr.mxu0 %v495
    %793 = vmatpush1.msra.mxu0 %v494
    %794 = vmatprep.subr.mxu0 %v499
    %795 = vmatpush1.msra.mxu0 %v498
    %796 = vmatprep.subr.mxu0 %v503
    %797 = vmatpush1.msra.mxu0 %v502
    %798 = vmatprep.subr.mxu0 %v507
    %799 = vmatpush1.msra.mxu0 %v506
    %800 = vmatprep.subr.mxu0 %v511
    %801 = vmatpush1.msra.mxu0 %v510
    %802 = vmatprep.subr.mxu0 %v515
    %803 = vmatpush1.msra.mxu0 %v514
    %804 = vmatprep.subr.mxu0 %v519
    %805 = vmatpush1.msra.mxu0 %v518
    %806 = vmatprep.subr.mxu0 %v523
    %807 = vmatpush1.msra.mxu0 %v522
    %808 = vmatprep.subr.mxu0 0.0
    %809 = vmatpush1.msra.mxu0 0.0
    %810 = vmatprep.subr.mxu0 0.0
    %811 = vmatpush1.msra.mxu0 0.0
    %812 = vmatprep.subr.mxu0 0.0
    %813 = vmatpush1.msra.mxu0 0.0
    %814 = vmatprep.subr.mxu0 0.0
    %815 = vmatpush1.msra.mxu0 0.0
    %816 = vmatprep.subr.mxu0 0.0
    %817 = vmatpush1.msra.mxu0 0.0
    %818 = vmatprep.subr.mxu0 0.0
    %819 = vmatpush1.msra.mxu0 0.0
    %820 = vmatprep.subr.mxu0 0.0
    %821 = vmatpush1.msra.mxu0 0.0
    %822 = vmatprep.subr.mxu0 0.0
    %823 = vmatpush1.msra.mxu0 0.0
    %824 = vmatprep.subr.mxu0 0.0
    %825 = vmatpush1.msra.mxu0 0.0
    %826 = vmatprep.subr.mxu0 0.0
    %827 = vmatpush1.msra.mxu0 0.0
    %828 = vmatprep.subr.mxu0 0.0
    %829 = vmatpush1.msra.mxu0 0.0
    %830 = vmatprep.subr.mxu0 0.0
    %831 = vmatpush1.msra.mxu0 0.0
    %832 = vmatprep.subr.mxu0 0.0
    %833 = vmatpush1.msra.mxu0 0.0
    %834 = vmatprep.subr.mxu0 0.0
    %835 = vmatpush1.msra.mxu0 0.0
    %836 = vmatprep.subr.mxu0 0.0
    %837 = vmatpush1.msra.mxu0 0.0
    %838 = vmatprep.subr.mxu0 0.0
    %839 = vmatpush1.msra.mxu0 0.0
    %840 = vmatprep.mubr.f32.mxu0 0.0
    %841 = vmatmul.mubr.f32.gmra.mrb[0].mxu0 %v699
    %v842 = vpop.f32.mrb[0].mxu0
    %v843 = vadd.f32 0.0, %v842
    %v844 = vpop.f32.mrb[0].mxu0
    %v845 = vadd.f32 0.0, %v844
    %846 = vdwg.mxu0
    %v847 = vadd.f32 %v701, %v772
    %v848 = vadd.f32 %v702, %v774
    %v849 = vadd.f32 %v703, %v843
    %v850 = vadd.f32 %v704, %v845
    %v851 = vxor.u32 %v847, 2147483648
    %v852 = vxor.u32 %v848, 2147483648
    %v853 = vxor.u32 %v849, 2147483648
    %v854 = vmul.f32 %v851, 1.442695
    %v855 = vpow.pop %v854
    %v856 = vmul.f32 %v852, 1.442695
    %v857 = vpow.pop %v856
    %v858 = vmul.f32 %v853, 1.442695
    %v859 = vpow.pop %v858
    %v860 = vadd.f32 %v855, 1.0
    %v861 = vadd.f32 %v857, 1.0
    %v862 = vadd.f32 %v859, 1.0
    %v863 = vrcp.pop %v860
    %v864 = vmul.f32 1.0, %v863
    %v865 = vrcp.pop %v861
    %v866 = vmul.f32 1.0, %v865
    %v867 = vrcp.pop %v862
    %v868 = vmul.f32 1.0, %v867
    %v869 = vtanh.pop %v850
    %v870 = vmul.f32 %v866, %v697
    %v871 = vmul.f32 %v864, %v869
    %v872 = vadd.f32 %v870, %v871
    %v873 = vtanh.pop %v872
    %v874 = vmul.f32 %v868, %v873
    %875 = vst [vmem:[#allocation3 + $0x8] sm:$0xff] %v874
    %v876 = vld [vmem:[#allocation2 + $0x40] sm:$0xff]
    %v877 = vld [vmem:[#allocation2 + $0x48] sm:$0xff]
    %v878 = vld [vmem:[#allocation2 + $0x50] sm:$0xff]
    %v879 = vld [vmem:[#allocation2 + $0x58] sm:$0xff]
    %880 = vmatprep.subr.mxu0 %v461
    %881 = vmatpush1.msra.mxu0 %v460
    %882 = vmatprep.subr.mxu0 %v465
    %883 = vmatpush1.msra.mxu0 %v464
    %884 = vmatprep.subr.mxu0 %v469
    %885 = vmatpush1.msra.mxu0 %v468
    %886 = vmatprep.subr.mxu0 %v473
    %887 = vmatpush1.msra.mxu0 %v472
    %888 = vmatprep.subr.mxu0 %v477
    %889 = vmatpush1.msra.mxu0 %v476
    %890 = vmatprep.subr.mxu0 %v481
    %891 = vmatpush1.msra.mxu0 %v480
    %892 = vmatprep.subr.mxu0 %v485
    %893 = vmatpush1.msra.mxu0 %v484
    %894 = vmatprep.subr.mxu0 %v489
    %895 = vmatpush1.msra.mxu0 %v488
    %896 = vmatprep.subr.mxu0 %v493
    %897 = vmatpush1.msra.mxu0 %v492
    %898 = vmatprep.subr.mxu0 %v497
    %899 = vmatpush1.msra.mxu0 %v496
    %900 = vmatprep.subr.mxu0 %v501
    %901 = vmatpush1.msra.mxu0 %v500
    %902 = vmatprep.subr.mxu0 %v505
    %903 = vmatpush1.msra.mxu0 %v504
    %904 = vmatprep.subr.mxu0 %v509
    %905 = vmatpush1.msra.mxu0 %v508
    %906 = vmatprep.subr.mxu0 %v513
    %907 = vmatpush1.msra.mxu0 %v512
    %908 = vmatprep.subr.mxu0 %v517
    %909 = vmatpush1.msra.mxu0 %v516
    %910 = vmatprep.subr.mxu0 %v521
    %911 = vmatpush1.msra.mxu0 %v520
    %912 = vmatprep.subr.mxu0 0.0
    %913 = vmatpush1.msra.mxu0 0.0
    %914 = vmatprep.subr.mxu0 0.0
    %915 = vmatpush1.msra.mxu0 0.0
    %916 = vmatprep.subr.mxu0 0.0
    %917 = vmatpush1.msra.mxu0 0.0
    %918 = vmatprep.subr.mxu0 0.0
    %919 = vmatpush1.msra.mxu0 0.0
    %920 = vmatprep.subr.mxu0 0.0
    %921 = vmatpush1.msra.mxu0 0.0
    %922 = vmatprep.subr.mxu0 0.0
    %923 = vmatpush1.msra.mxu0 0.0
    %924 = vmatprep.subr.mxu0 0.0
    %925 = vmatpush1.msra.mxu0 0.0
    %926 = vmatprep.subr.mxu0 0.0
    %927 = vmatpush1.msra.mxu0 0.0
    %928 = vmatprep.subr.mxu0 0.0
    %929 = vmatpush1.msra.mxu0 0.0
    %930 = vmatprep.subr.mxu0 0.0
    %931 = vmatpush1.msra.mxu0 0.0
    %932 = vmatprep.subr.mxu0 0.0
    %933 = vmatpush1.msra.mxu0 0.0
    %934 = vmatprep.subr.mxu0 0.0
    %935 = vmatpush1.msra.mxu0 0.0
    %936 = vmatprep.subr.mxu0 0.0
    %937 = vmatpush1.msra.mxu0 0.0
    %938 = vmatprep.subr.mxu0 0.0
    %939 = vmatpush1.msra.mxu0 0.0
    %940 = vmatprep.subr.mxu0 0.0
    %941 = vmatpush1.msra.mxu0 0.0
    %942 = vmatprep.subr.mxu0 0.0
    %943 = vmatpush1.msra.mxu0 0.0
    %944 = vmatprep.mubr.f32.mxu0 0.0
    %945 = vmatmul.mubr.f32.gmra.mrb[0].mxu0 %v874
    %v946 = vpop.f32.mrb[0].mxu0
    %v947 = vadd.f32 0.0, %v946
    %v948 = vpop.f32.mrb[0].mxu0
    %v949 = vadd.f32 0.0, %v948
    %950 = vdwg.mxu0
    %951 = vmatprep.subr.mxu0 %v463
    %952 = vmatpush1.msra.mxu0 %v462
    %953 = vmatprep.subr.mxu0 %v467
    %954 = vmatpush1.msra.mxu0 %v466
    %955 = vmatprep.subr.mxu0 %v471
    %956 = vmatpush1.msra.mxu0 %v470
    %957 = vmatprep.subr.mxu0 %v475
    %958 = vmatpush1.msra.mxu0 %v474
    %959 = vmatprep.subr.mxu0 %v479
    %960 = vmatpush1.msra.mxu0 %v478
    %961 = vmatprep.subr.mxu0 %v483
    %962 = vmatpush1.msra.mxu0 %v482
    %963 = vmatprep.subr.mxu0 %v487
    %964 = vmatpush1.msra.mxu0 %v486
    %965 = vmatprep.subr.mxu0 %v491
    %966 = vmatpush1.msra.mxu0 %v490
    %967 = vmatprep.subr.mxu0 %v495
    %968 = vmatpush1.msra.mxu0 %v494
    %969 = vmatprep.subr.mxu0 %v499
    %970 = vmatpush1.msra.mxu0 %v498
    %971 = vmatprep.subr.mxu0 %v503
    %972 = vmatpush1.msra.mxu0 %v502
    %973 = vmatprep.subr.mxu0 %v507
    %974 = vmatpush1.msra.mxu0 %v506
    %975 = vmatprep.subr.mxu0 %v511
    %976 = vmatpush1.msra.mxu0 %v510
    %977 = vmatprep.subr.mxu0 %v515
    %978 = vmatpush1.msra.mxu0 %v514
    %979 = vmatprep.subr.mxu0 %v519
    %980 = vmatpush1.msra.mxu0 %v518
    %981 = vmatprep.subr.mxu0 %v523
    %982 = vmatpush1.msra.mxu0 %v522
    %983 = vmatprep.subr.mxu0 0.0
    %984 = vmatpush1.msra.mxu0 0.0
    %985 = vmatprep.subr.mxu0 0.0
    %986 = vmatpush1.msra.mxu0 0.0
    %987 = vmatprep.subr.mxu0 0.0
    %988 = vmatpush1.msra.mxu0 0.0
    %989 = vmatprep.subr.mxu0 0.0
    %990 = vmatpush1.msra.mxu0 0.0
    %991 = vmatprep.subr.mxu0 0.0
    %992 = vmatpush1.msra.mxu0 0.0
    %993 = vmatprep.subr.mxu0 0.0
    %994 = vmatpush1.msra.mxu0 0.0
    %995 = vmatprep.subr.mxu0 0.0
    %996 = vmatpush1.msra.mxu0 0.0
    %997 = vmatprep.subr.mxu0 0.0
    %998 = vmatpush1.msra.mxu0 0.0
    %999 = vmatprep.subr.mxu0 0.0
    %1000 = vmatpush1.msra.mxu0 0.0
    %1001 = vmatprep.subr.mxu0 0.0
    %1002 = vmatpush1.msra.mxu0 0.0
    %1003 = vmatprep.subr.mxu0 0.0
    %1004 = vmatpush1.msra.mxu0 0.0
    %1005 = vmatprep.subr.mxu0 0.0
    %1006 = vmatpush1.msra.mxu0 0.0
    %1007 = vmatprep.subr.mxu0 0.0
    %1008 = vmatpush1.msra.mxu0 0.0
    %1009 = vmatprep.subr.mxu0 0.0
    %1010 = vmatpush1.msra.mxu0 0.0
    %1011 = vmatprep.subr.mxu0 0.0
    %1012 = vmatpush1.msra.mxu0 0.0
    %1013 = vmatprep.subr.mxu0 0.0
    %1014 = vmatpush1.msra.mxu0 0.0
    %1015 = vmatprep.mubr.f32.mxu0 0.0
    %1016 = vmatmul.mubr.f32.gmra.mrb[0].mxu0 %v874
    %v1017 = vpop.f32.mrb[0].mxu0
    %v1018 = vadd.f32 0.0, %v1017
    %v1019 = vpop.f32.mrb[0].mxu0
    %v1020 = vadd.f32 0.0, %v1019
    %1021 = vdwg.mxu0
    %v1022 = vadd.f32 %v876, %v947
    %v1023 = vadd.f32 %v877, %v949
    %v1024 = vadd.f32 %v878, %v1018
    %v1025 = vadd.f32 %v879, %v1020
    %v1026 = vxor.u32 %v1022, 2147483648
    %v1027 = vxor.u32 %v1023, 2147483648
    %v1028 = vxor.u32 %v1024, 2147483648
    %v1029 = vmul.f32 %v1026, 1.442695
    %v1030 = vpow.pop %v1029
    %v1031 = vmul.f32 %v1027, 1.442695
    %v1032 = vpow.pop %v1031
    %v1033 = vmul.f32 %v1028, 1.442695
    %v1034 = vpow.pop %v1033
    %v1035 = vadd.f32 %v1030, 1.0
    %v1036 = vadd.f32 %v1032, 1.0
    %v1037 = vadd.f32 %v1034, 1.0
    %v1038 = vrcp.pop %v1035
    %v1039 = vmul.f32 1.0, %v1038
    %v1040 = vrcp.pop %v1036
    %v1041 = vmul.f32 1.0, %v1040
    %v1042 = vrcp.pop %v1037
    %v1043 = vmul.f32 1.0, %v1042
    %v1044 = vtanh.pop %v1025
    %v1045 = vmul.f32 %v1041, %v872
    %v1046 = vmul.f32 %v1039, %v1044
    %v1047 = vadd.f32 %v1045, %v1046
    %v1048 = vtanh.pop %v1047
    %v1049 = vmul.f32 %v1043, %v1048
    %1050 = vst [vmem:[#allocation3 + $0x10] sm:$0xff] %v1049
    %v1051 = vld [vmem:[#allocation2 + $0x60] sm:$0xff]
    %v1052 = vld [vmem:[#allocation2 + $0x68] sm:$0xff]
    %v1053 = vld [vmem:[#allocation2 + $0x70] sm:$0xff]
    %v1054 = vld [vmem:[#allocation2 + $0x78] sm:$0xff]
    %1055 = vmatprep.subr.mxu0 %v461
    %1056 = vmatpush1.msra.mxu0 %v460
    %1057 = vmatprep.subr.mxu0 %v465
    %1058 = vmatpush1.msra.mxu0 %v464
    %1059 = vmatprep.subr.mxu0 %v469
    %1060 = vmatpush1.msra.mxu0 %v468
    %1061 = vmatprep.subr.mxu0 %v473
    %1062 = vmatpush1.msra.mxu0 %v472
    %1063 = vmatprep.subr.mxu0 %v477
    %1064 = vmatpush1.msra.mxu0 %v476
    %1065 = vmatprep.subr.mxu0 %v481
    %1066 = vmatpush1.msra.mxu0 %v480
    %1067 = vmatprep.subr.mxu0 %v485
    %1068 = vmatpush1.msra.mxu0 %v484
    %1069 = vmatprep.subr.mxu0 %v489
    %1070 = vmatpush1.msra.mxu0 %v488
    %1071 = vmatprep.subr.mxu0 %v493
    %1072 = vmatpush1.msra.mxu0 %v492
    %1073 = vmatprep.subr.mxu0 %v497
    %1074 = vmatpush1.msra.mxu0 %v496
    %1075 = vmatprep.subr.mxu0 %v501
    %1076 = vmatpush1.msra.mxu0 %v500
    %1077 = vmatprep.subr.mxu0 %v505
    %1078 = vmatpush1.msra.mxu0 %v504
    %1079 = vmatprep.subr.mxu0 %v509
    %1080 = vmatpush1.msra.mxu0 %v508
    %1081 = vmatprep.subr.mxu0 %v513
    %1082 = vmatpush1.msra.mxu0 %v512
    %1083 = vmatprep.subr.mxu0 %v517
    %1084 = vmatpush1.msra.mxu0 %v516
    %1085 = vmatprep.subr.mxu0 %v521
    %1086 = vmatpush1.msra.mxu0 %v520
    %1087 = vmatprep.subr.mxu0 0.0
    %1088 = vmatpush1.msra.mxu0 0.0
    %1089 = vmatprep.subr.mxu0 0.0
    %1090 = vmatpush1.msra.mxu0 0.0
    %1091 = vmatprep.subr.mxu0 0.0
    %1092 = vmatpush1.msra.mxu0 0.0
    %1093 = vmatprep.subr.mxu0 0.0
    %1094 = vmatpush1.msra.mxu0 0.0
    %1095 = vmatprep.subr.mxu0 0.0
    %1096 = vmatpush1.msra.mxu0 0.0
    %1097 = vmatprep.subr.mxu0 0.0
    %1098 = vmatpush1.msra.mxu0 0.0
    %1099 = vmatprep.subr.mxu0 0.0
    %1100 = vmatpush1.msra.mxu0 0.0
    %1101 = vmatprep.subr.mxu0 0.0
    %1102 = vmatpush1.msra.mxu0 0.0
    %1103 = vmatprep.subr.mxu0 0.0
    %1104 = vmatpush1.msra.mxu0 0.0
    %1105 = vmatprep.subr.mxu0 0.0
    %1106 = vmatpush1.msra.mxu0 0.0
    %1107 = vmatprep.subr.mxu0 0.0
    %1108 = vmatpush1.msra.mxu0 0.0
    %1109 = vmatprep.subr.mxu0 0.0
    %1110 = vmatpush1.msra.mxu0 0.0
    %1111 = vmatprep.subr.mxu0 0.0
    %1112 = vmatpush1.msra.mxu0 0.0
    %1113 = vmatprep.subr.mxu0 0.0
    %1114 = vmatpush1.msra.mxu0 0.0
    %1115 = vmatprep.subr.mxu0 0.0
    %1116 = vmatpush1.msra.mxu0 0.0
    %1117 = vmatprep.subr.mxu0 0.0
    %1118 = vmatpush1.msra.mxu0 0.0
    %1119 = vmatprep.mubr.f32.mxu0 0.0
    %1120 = vmatmul.mubr.f32.gmra.mrb[0].mxu0 %v1049
    %v1121 = vpop.f32.mrb[0].mxu0
    %v1122 = vadd.f32 0.0, %v1121
    %v1123 = vpop.f32.mrb[0].mxu0
    %v1124 = vadd.f32 0.0, %v1123
    %1125 = vdwg.mxu0
    %1126 = vmatprep.subr.mxu0 %v463
    %1127 = vmatpush1.msra.mxu0 %v462
    %1128 = vmatprep.subr.mxu0 %v467
    %1129 = vmatpush1.msra.mxu0 %v466
    %1130 = vmatprep.subr.mxu0 %v471
    %1131 = vmatpush1.msra.mxu0 %v470
    %1132 = vmatprep.subr.mxu0 %v475
    %1133 = vmatpush1.msra.mxu0 %v474
    %1134 = vmatprep.subr.mxu0 %v479
    %1135 = vmatpush1.msra.mxu0 %v478
    %1136 = vmatprep.subr.mxu0 %v483
    %1137 = vmatpush1.msra.mxu0 %v482
    %1138 = vmatprep.subr.mxu0 %v487
    %1139 = vmatpush1.msra.mxu0 %v486
    %1140 = vmatprep.subr.mxu0 %v491
    %1141 = vmatpush1.msra.mxu0 %v490
    %1142 = vmatprep.subr.mxu0 %v495
    %1143 = vmatpush1.msra.mxu0 %v494
    %1144 = vmatprep.subr.mxu0 %v499
    %1145 = vmatpush1.msra.mxu0 %v498
    %1146 = vmatprep.subr.mxu0 %v503
    %1147 = vmatpush1.msra.mxu0 %v502
    %1148 = vmatprep.subr.mxu0 %v507
    %1149 = vmatpush1.msra.mxu0 %v506
    %1150 = vmatprep.subr.mxu0 %v511
    %1151 = vmatpush1.msra.mxu0 %v510
    %1152 = vmatprep.subr.mxu0 %v515
    %1153 = vmatpush1.msra.mxu0 %v514
    %1154 = vmatprep.subr.mxu0 %v519
    %1155 = vmatpush1.msra.mxu0 %v518
    %1156 = vmatprep.subr.mxu0 %v523
    %1157 = vmatpush1.msra.mxu0 %v522
    %1158 = vmatprep.subr.mxu0 0.0
    %1159 = vmatpush1.msra.mxu0 0.0
    %1160 = vmatprep.subr.mxu0 0.0
    %1161 = vmatpush1.msra.mxu0 0.0
    %1162 = vmatprep.subr.mxu0 0.0
    %1163 = vmatpush1.msra.mxu0 0.0
    %1164 = vmatprep.subr.mxu0 0.0
    %1165 = vmatpush1.msra.mxu0 0.0
    %1166 = vmatprep.subr.mxu0 0.0
    %1167 = vmatpush1.msra.mxu0 0.0
    %1168 = vmatprep.subr.mxu0 0.0
    %1169 = vmatpush1.msra.mxu0 0.0
    %1170 = vmatprep.subr.mxu0 0.0
    %1171 = vmatpush1.msra.mxu0 0.0
    %1172 = vmatprep.subr.mxu0 0.0
    %1173 = vmatpush1.msra.mxu0 0.0
    %1174 = vmatprep.subr.mxu0 0.0
    %1175 = vmatpush1.msra.mxu0 0.0
    %1176 = vmatprep.subr.mxu0 0.0
    %1177 = vmatpush1.msra.mxu0 0.0
    %1178 = vmatprep.subr.mxu0 0.0
    %1179 = vmatpush1.msra.mxu0 0.0
    %1180 = vmatprep.subr.mxu0 0.0
    %1181 = vmatpush1.msra.mxu0 0.0
    %1182 = vmatprep.subr.mxu0 0.0
    %1183 = vmatpush1.msra.mxu0 0.0
    %1184 = vmatprep.subr.mxu0 0.0
    %1185 = vmatpush1.msra.mxu0 0.0
    %1186 = vmatprep.subr.mxu0 0.0
    %1187 = vmatpush1.msra.mxu0 0.0
    %1188 = vmatprep.subr.mxu0 0.0
    %1189 = vmatpush1.msra.mxu0 0.0
    %1190 = vmatprep.mubr.f32.mxu0 0.0
    %1191 = vmatmul.mubr.f32.gmra.mrb[0].mxu0 %v1049
    %v1192 = vpop.f32.mrb[0].mxu0
    %v1193 = vadd.f32 0.0, %v1192
    %v1194 = vpop.f32.mrb[0].mxu0
    %v1195 = vadd.f32 0.0, %v1194
    %1196 = vdwg.mxu0
    %v1197 = vadd.f32 %v1051, %v1122
    %v1198 = vadd.f32 %v1052, %v1124
    %v1199 = vadd.f32 %v1053, %v1193
    %v1200 = vadd.f32 %v1054, %v1195
    %v1201 = vxor.u32 %v1197, 2147483648
    %v1202 = vxor.u32 %v1198, 2147483648
    %v1203 = vxor.u32 %v1199, 2147483648
    %v1204 = vmul.f32 %v1201, 1.442695
    %v1205 = vpow.pop %v1204
    %v1206 = vmul.f32 %v1202, 1.442695
    %v1207 = vpow.pop %v1206
    %v1208 = vmul.f32 %v1203, 1.442695
    %v1209 = vpow.pop %v1208
    %v1210 = vadd.f32 %v1205, 1.0
    %v1211 = vadd.f32 %v1207, 1.0
    %v1212 = vadd.f32 %v1209, 1.0
    %v1213 = vrcp.pop %v1210
    %v1214 = vmul.f32 1.0, %v1213
    %v1215 = vrcp.pop %v1211
    %v1216 = vmul.f32 1.0, %v1215
    %v1217 = vrcp.pop %v1212
    %v1218 = vmul.f32 1.0, %v1217
    %v1219 = vtanh.pop %v1200
    %v1220 = vmul.f32 %v1216, %v1047
    %v1221 = vmul.f32 %v1214, %v1219
    %v1222 = vadd.f32 %v1220, %v1221
    %v1223 = vtanh.pop %v1222
    %v1224 = vmul.f32 %v1218, %v1223
    %1225 = vst [vmem:[#allocation3 + $0x18] sm:$0xff] %v1224
    %v1226 = vld [vmem:[#allocation2 + $0x80] sm:$0xff]
    %v1227 = vld [vmem:[#allocation2 + $0x88] sm:$0xff]
    %v1228 = vld [vmem:[#allocation2 + $0x90] sm:$0xff]
    %v1229 = vld [vmem:[#allocation2 + $0x98] sm:$0xff]
    %1230 = vmatprep.subr.mxu0 %v461
    %1231 = vmatpush1.msra.mxu0 %v460
    %1232 = vmatprep.subr.mxu0 %v465
    %1233 = vmatpush1.msra.mxu0 %v464
    %1234 = vmatprep.subr.mxu0 %v469
    %1235 = vmatpush1.msra.mxu0 %v468
    %1236 = vmatprep.subr.mxu0 %v473
    %1237 = vmatpush1.msra.mxu0 %v472
    %1238 = vmatprep.subr.mxu0 %v477
    %1239 = vmatpush1.msra.mxu0 %v476
    %1240 = vmatprep.subr.mxu0 %v481
    %1241 = vmatpush1.msra.mxu0 %v480
    %1242 = vmatprep.subr.mxu0 %v485
    %1243 = vmatpush1.msra.mxu0 %v484
    %1244 = vmatprep.subr.mxu0 %v489
    %1245 = vmatpush1.msra.mxu0 %v488
    %1246 = vmatprep.subr.mxu0 %v493
    %1247 = vmatpush1.msra.mxu0 %v492
    %1248 = vmatprep.subr.mxu0 %v497
    %1249 = vmatpush1.msra.mxu0 %v496
    %1250 = vmatprep.subr.mxu0 %v501
    %1251 = vmatpush1.msra.mxu0 %v500
    %1252 = vmatprep.subr.mxu0 %v505
    %1253 = vmatpush1.msra.mxu0 %v504
    %1254 = vmatprep.subr.mxu0 %v509
    %1255 = vmatpush1.msra.mxu0 %v508
    %1256 = vmatprep.subr.mxu0 %v513
    %1257 = vmatpush1.msra.mxu0 %v512
    %1258 = vmatprep.subr.mxu0 %v517
    %1259 = vmatpush1.msra.mxu0 %v516
    %1260 = vmatprep.subr.mxu0 %v521
    %1261 = vmatpush1.msra.mxu0 %v520
    %1262 = vmatprep.subr.mxu0 0.0
    %1263 = vmatpush1.msra.mxu0 0.0
    %1264 = vmatprep.subr.mxu0 0.0
    %1265 = vmatpush1.msra.mxu0 0.0
    %1266 = vmatprep.subr.mxu0 0.0
    %1267 = vmatpush1.msra.mxu0 0.0
    %1268 = vmatprep.subr.mxu0 0.0
    %1269 = vmatpush1.msra.mxu0 0.0
    %1270 = vmatprep.subr.mxu0 0.0
    %1271 = vmatpush1.msra.mxu0 0.0
    %1272 = vmatprep.subr.mxu0 0.0
    %1273 = vmatpush1.msra.mxu0 0.0
    %1274 = vmatprep.subr.mxu0 0.0
    %1275 = vmatpush1.msra.mxu0 0.0
    %1276 = vmatprep.subr.mxu0 0.0
    %1277 = vmatpush1.msra.mxu0 0.0
    %1278 = vmatprep.subr.mxu0 0.0
    %1279 = vmatpush1.msra.mxu0 0.0
    %1280 = vmatprep.subr.mxu0 0.0
    %1281 = vmatpush1.msra.mxu0 0.0
    %1282 = vmatprep.subr.mxu0 0.0
    %1283 = vmatpush1.msra.mxu0 0.0
    %1284 = vmatprep.subr.mxu0 0.0
    %1285 = vmatpush1.msra.mxu0 0.0
    %1286 = vmatprep.subr.mxu0 0.0
    %1287 = vmatpush1.msra.mxu0 0.0
    %1288 = vmatprep.subr.mxu0 0.0
    %1289 = vmatpush1.msra.mxu0 0.0
    %1290 = vmatprep.subr.mxu0 0.0
    %1291 = vmatpush1.msra.mxu0 0.0
    %1292 = vmatprep.subr.mxu0 0.0
    %1293 = vmatpush1.msra.mxu0 0.0
    %1294 = vmatprep.mubr.f32.mxu0 0.0
    %1295 = vmatmul.mubr.f32.gmra.mrb[0].mxu0 %v1224
    %v1296 = vpop.f32.mrb[0].mxu0
    %v1297 = vadd.f32 0.0, %v1296
    %v1298 = vpop.f32.mrb[0].mxu0
    %v1299 = vadd.f32 0.0, %v1298
    %1300 = vdwg.mxu0
    %1301 = vmatprep.subr.mxu0 %v463
    %1302 = vmatpush1.msra.mxu0 %v462
    %1303 = vmatprep.subr.mxu0 %v467
    %1304 = vmatpush1.msra.mxu0 %v466
    %1305 = vmatprep.subr.mxu0 %v471
    %1306 = vmatpush1.msra.mxu0 %v470
    %1307 = vmatprep.subr.mxu0 %v475
    %1308 = vmatpush1.msra.mxu0 %v474
    %1309 = vmatprep.subr.mxu0 %v479
    %1310 = vmatpush1.msra.mxu0 %v478
    %1311 = vmatprep.subr.mxu0 %v483
    %1312 = vmatpush1.msra.mxu0 %v482
    %1313 = vmatprep.subr.mxu0 %v487
    %1314 = vmatpush1.msra.mxu0 %v486
    %1315 = vmatprep.subr.mxu0 %v491
    %1316 = vmatpush1.msra.mxu0 %v490
    %1317 = vmatprep.subr.mxu0 %v495
    %1318 = vmatpush1.msra.mxu0 %v494
    %1319 = vmatprep.subr.mxu0 %v499
    %1320 = vmatpush1.msra.mxu0 %v498
    %1321 = vmatprep.subr.mxu0 %v503
    %1322 = vmatpush1.msra.mxu0 %v502
    %1323 = vmatprep.subr.mxu0 %v507
    %1324 = vmatpush1.msra.mxu0 %v506
    %1325 = vmatprep.subr.mxu0 %v511
    %1326 = vmatpush1.msra.mxu0 %v510
    %1327 = vmatprep.subr.mxu0 %v515
    %1328 = vmatpush1.msra.mxu0 %v514
    %1329 = vmatprep.subr.mxu0 %v519
    %1330 = vmatpush1.msra.mxu0 %v518
    %1331 = vmatprep.subr.mxu0 %v523
    %1332 = vmatpush1.msra.mxu0 %v522
    %1333 = vmatprep.subr.mxu0 0.0
    %1334 = vmatpush1.msra.mxu0 0.0
    %1335 = vmatprep.subr.mxu0 0.0
    %1336 = vmatpush1.msra.mxu0 0.0
    %1337 = vmatprep.subr.mxu0 0.0
    %1338 = vmatpush1.msra.mxu0 0.0
    %1339 = vmatprep.subr.mxu0 0.0
    %1340 = vmatpush1.msra.mxu0 0.0
    %1341 = vmatprep.subr.mxu0 0.0
    %1342 = vmatpush1.msra.mxu0 0.0
    %1343 = vmatprep.subr.mxu0 0.0
    %1344 = vmatpush1.msra.mxu0 0.0
    %1345 = vmatprep.subr.mxu0 0.0
    %1346 = vmatpush1.msra.mxu0 0.0
    %1347 = vmatprep.subr.mxu0 0.0
    %1348 = vmatpush1.msra.mxu0 0.0
    %1349 = vmatprep.subr.mxu0 0.0
    %1350 = vmatpush1.msra.mxu0 0.0
    %1351 = vmatprep.subr.mxu0 0.0
    %1352 = vmatpush1.msra.mxu0 0.0
    %1353 = vmatprep.subr.mxu0 0.0
    %1354 = vmatpush1.msra.mxu0 0.0
    %1355 = vmatprep.subr.mxu0 0.0
    %1356 = vmatpush1.msra.mxu0 0.0
    %1357 = vmatprep.subr.mxu0 0.0
    %1358 = vmatpush1.msra.mxu0 0.0
    %1359 = vmatprep.subr.mxu0 0.0
    %1360 = vmatpush1.msra.mxu0 0.0
    %1361 = vmatprep.subr.mxu0 0.0
    %1362 = vmatpush1.msra.mxu0 0.0
    %1363 = vmatprep.subr.mxu0 0.0
    %1364 = vmatpush1.msra.mxu0 0.0
    %1365 = vmatprep.mubr.f32.mxu0 0.0
    %1366 = vmatmul.mubr.f32.gmra.mrb[0].mxu0 %v1224
    %v1367 = vpop.f32.mrb[0].mxu0
    %v1368 = vadd.f32 0.0, %v1367
    %v1369 = vpop.f32.mrb[0].mxu0
    %v1370 = vadd.f32 0.0, %v1369
    %1371 = vdwg.mxu0
    %v1372 = vadd.f32 %v1226, %v1297
    %v1373 = vadd.f32 %v1227, %v1299
    %v1374 = vadd.f32 %v1228, %v1368
    %v1375 = vadd.f32 %v1229, %v1370
    %v1376 = vxor.u32 %v1372, 2147483648
    %v1377 = vxor.u32 %v1373, 2147483648
    %v1378 = vxor.u32 %v1374, 2147483648
    %v1379 = vmul.f32 %v1376, 1.442695
    %v1380 = vpow.pop %v1379
    %v1381 = vmul.f32 %v1377, 1.442695
    %v1382 = vpow.pop %v1381
    %v1383 = vmul.f32 %v1378, 1.442695
    %v1384 = vpow.pop %v1383
    %v1385 = vadd.f32 %v1380, 1.0
    %v1386 = vadd.f32 %v1382, 1.0
    %v1387 = vadd.f32 %v1384, 1.0
    %v1388 = vrcp.pop %v1385
    %v1389 = vmul.f32 1.0, %v1388
    %v1390 = vrcp.pop %v1386
    %v1391 = vmul.f32 1.0, %v1390
    %v1392 = vrcp.pop %v1387
    %v1393 = vmul.f32 1.0, %v1392
    %v1394 = vtanh.pop %v1375
    %v1395 = vmul.f32 %v1391, %v1222
    %v1396 = vmul.f32 %v1389, %v1394
    %v1397 = vadd.f32 %v1395, %v1396
    %v1398 = vtanh.pop %v1397
    %v1399 = vmul.f32 %v1393, %v1398
    %1400 = vst [vmem:[#allocation3 + $0x20] sm:$0xff] %v1399
    %v1401 = vld [vmem:[#allocation2 + $0xa0] sm:$0xff]
    %v1402 = vld [vmem:[#allocation2 + $0xa8] sm:$0xff]
    %v1403 = vld [vmem:[#allocation2 + $0xb0] sm:$0xff]
    %v1404 = vld [vmem:[#allocation2 + $0xb8] sm:$0xff]
    %1405 = vmatprep.subr.mxu0 %v461
    %1406 = vmatpush1.msra.mxu0 %v460
    %1407 = vmatprep.subr.mxu0 %v465
    %1408 = vmatpush1.msra.mxu0 %v464
    %1409 = vmatprep.subr.mxu0 %v469
    %1410 = vmatpush1.msra.mxu0 %v468
    %1411 = vmatprep.subr.mxu0 %v473
    %1412 = vmatpush1.msra.mxu0 %v472
    %1413 = vmatprep.subr.mxu0 %v477
    %1414 = vmatpush1.msra.mxu0 %v476
    %1415 = vmatprep.subr.mxu0 %v481
    %1416 = vmatpush1.msra.mxu0 %v480
    %1417 = vmatprep.subr.mxu0 %v485
    %1418 = vmatpush1.msra.mxu0 %v484
    %1419 = vmatprep.subr.mxu0 %v489
    %1420 = vmatpush1.msra.mxu0 %v488
    %1421 = vmatprep.subr.mxu0 %v493
    %1422 = vmatpush1.msra.mxu0 %v492
    %1423 = vmatprep.subr.mxu0 %v497
    %1424 = vmatpush1.msra.mxu0 %v496
    %1425 = vmatprep.subr.mxu0 %v501
    %1426 = vmatpush1.msra.mxu0 %v500
    %1427 = vmatprep.subr.mxu0 %v505
    %1428 = vmatpush1.msra.mxu0 %v504
    %1429 = vmatprep.subr.mxu0 %v509
    %1430 = vmatpush1.msra.mxu0 %v508
    %1431 = vmatprep.subr.mxu0 %v513
    %1432 = vmatpush1.msra.mxu0 %v512
    %1433 = vmatprep.subr.mxu0 %v517
    %1434 = vmatpush1.msra.mxu0 %v516
    %1435 = vmatprep.subr.mxu0 %v521
    %1436 = vmatpush1.msra.mxu0 %v520
    %1437 = vmatprep.subr.mxu0 0.0
    %1438 = vmatpush1.msra.mxu0 0.0
    %1439 = vmatprep.subr.mxu0 0.0
    %1440 = vmatpush1.msra.mxu0 0.0
    %1441 = vmatprep.subr.mxu0 0.0
    %1442 = vmatpush1.msra.mxu0 0.0
    %1443 = vmatprep.subr.mxu0 0.0
    %1444 = vmatpush1.msra.mxu0 0.0
    %1445 = vmatprep.subr.mxu0 0.0
    %1446 = vmatpush1.msra.mxu0 0.0
    %1447 = vmatprep.subr.mxu0 0.0
    %1448 = vmatpush1.msra.mxu0 0.0
    %1449 = vmatprep.subr.mxu0 0.0
    %1450 = vmatpush1.msra.mxu0 0.0
    %1451 = vmatprep.subr.mxu0 0.0
    %1452 = vmatpush1.msra.mxu0 0.0
    %1453 = vmatprep.subr.mxu0 0.0
    %1454 = vmatpush1.msra.mxu0 0.0
    %1455 = vmatprep.subr.mxu0 0.0
    %1456 = vmatpush1.msra.mxu0 0.0
    %1457 = vmatprep.subr.mxu0 0.0
    %1458 = vmatpush1.msra.mxu0 0.0
    %1459 = vmatprep.subr.mxu0 0.0
    %1460 = vmatpush1.msra.mxu0 0.0
    %1461 = vmatprep.subr.mxu0 0.0
    %1462 = vmatpush1.msra.mxu0 0.0
    %1463 = vmatprep.subr.mxu0 0.0
    %1464 = vmatpush1.msra.mxu0 0.0
    %1465 = vmatprep.subr.mxu0 0.0
    %1466 = vmatpush1.msra.mxu0 0.0
    %1467 = vmatprep.subr.mxu0 0.0
    %1468 = vmatpush1.msra.mxu0 0.0
    %1469 = vmatprep.mubr.f32.mxu0 0.0
    %1470 = vmatmul.mubr.f32.gmra.mrb[0].mxu0 %v1399
    %v1471 = vpop.f32.mrb[0].mxu0
    %v1472 = vadd.f32 0.0, %v1471
    %v1473 = vpop.f32.mrb[0].mxu0
    %v1474 = vadd.f32 0.0, %v1473
    %1475 = vdwg.mxu0
    %1476 = vmatprep.subr.mxu0 %v463
    %1477 = vmatpush1.msra.mxu0 %v462
    %1478 = vmatprep.subr.mxu0 %v467
    %1479 = vmatpush1.msra.mxu0 %v466
    %1480 = vmatprep.subr.mxu0 %v471
    %1481 = vmatpush1.msra.mxu0 %v470
    %1482 = vmatprep.subr.mxu0 %v475
    %1483 = vmatpush1.msra.mxu0 %v474
    %1484 = vmatprep.subr.mxu0 %v479
    %1485 = vmatpush1.msra.mxu0 %v478
    %1486 = vmatprep.subr.mxu0 %v483
    %1487 = vmatpush1.msra.mxu0 %v482
    %1488 = vmatprep.subr.mxu0 %v487
    %1489 = vmatpush1.msra.mxu0 %v486
    %1490 = vmatprep.subr.mxu0 %v491
    %1491 = vmatpush1.msra.mxu0 %v490
    %1492 = vmatprep.subr.mxu0 %v495
    %1493 = vmatpush1.msra.mxu0 %v494
    %1494 = vmatprep.subr.mxu0 %v499
    %1495 = vmatpush1.msra.mxu0 %v498
    %1496 = vmatprep.subr.mxu0 %v503
    %1497 = vmatpush1.msra.mxu0 %v502
    %1498 = vmatprep.subr.mxu0 %v507
    %1499 = vmatpush1.msra.mxu0 %v506
    %1500 = vmatprep.subr.mxu0 %v511
    %1501 = vmatpush1.msra.mxu0 %v510
    %1502 = vmatprep.subr.mxu0 %v515
    %1503 = vmatpush1.msra.mxu0 %v514
    %1504 = vmatprep.subr.mxu0 %v519
    %1505 = vmatpush1.msra.mxu0 %v518
    %1506 = vmatprep.subr.mxu0 %v523
    %1507 = vmatpush1.msra.mxu0 %v522
    %1508 = vmatprep.subr.mxu0 0.0
    %1509 = vmatpush1.msra.mxu0 0.0
    %1510 = vmatprep.subr.mxu0 0.0
    %1511 = vmatpush1.msra.mxu0 0.0
    %1512 = vmatprep.subr.mxu0 0.0
    %1513 = vmatpush1.msra.mxu0 0.0
    %1514 = vmatprep.subr.mxu0 0.0
    %1515 = vmatpush1.msra.mxu0 0.0
    %1516 = vmatprep.subr.mxu0 0.0
    %1517 = vmatpush1.msra.mxu0 0.0
    %1518 = vmatprep.subr.mxu0 0.0
    %1519 = vmatpush1.msra.mxu0 0.0
    %1520 = vmatprep.subr.mxu0 0.0
    %1521 = vmatpush1.msra.mxu0 0.0
    %1522 = vmatprep.subr.mxu0 0.0
    %1523 = vmatpush1.msra.mxu0 0.0
    %1524 = vmatprep.subr.mxu0 0.0
    %1525 = vmatpush1.msra.mxu0 0.0
    %1526 = vmatprep.subr.mxu0 0.0
    %1527 = vmatpush1.msra.mxu0 0.0
    %1528 = vmatprep.subr.mxu0 0.0
    %1529 = vmatpush1.msra.mxu0 0.0
    %1530 = vmatprep.subr.mxu0 0.0
    %1531 = vmatpush1.msra.mxu0 0.0
    %1532 = vmatprep.subr.mxu0 0.0
    %1533 = vmatpush1.msra.mxu0 0.0
    %1534 = vmatprep.subr.mxu0 0.0
    %1535 = vmatpush1.msra.mxu0 0.0
    %1536 = vmatprep.subr.mxu0 0.0
    %1537 = vmatpush1.msra.mxu0 0.0
    %1538 = vmatprep.subr.mxu0 0.0
    %1539 = vmatpush1.msra.mxu0 0.0
    %1540 = vmatprep.mubr.f32.mxu0 0.0
    %1541 = vmatmul.mubr.f32.gmra.mrb[0].mxu0 %v1399
    %v1542 = vpop.f32.mrb[0].mxu0
    %v1543 = vadd.f32 0.0, %v1542
    %v1544 = vpop.f32.mrb[0].mxu0
    %v1545 = vadd.f32 0.0, %v1544
    %1546 = vdwg.mxu0
    %v1547 = vadd.f32 %v1401, %v1472
    %v1548 = vadd.f32 %v1402, %v1474
    %v1549 = vadd.f32 %v1403, %v1543
    %v1550 = vadd.f32 %v1404, %v1545
    %v1551 = vxor.u32 %v1547, 2147483648
    %v1552 = vxor.u32 %v1548, 2147483648
    %v1553 = vxor.u32 %v1549, 2147483648
    %v1554 = vmul.f32 %v1551, 1.442695
    %v1555 = vpow.pop %v1554
    %v1556 = vmul.f32 %v1552, 1.442695
    %v1557 = vpow.pop %v1556
    %v1558 = vmul.f32 %v1553, 1.442695
    %v1559 = vpow.pop %v1558
    %v1560 = vadd.f32 %v1555, 1.0
    %v1561 = vadd.f32 %v1557, 1.0
    %v1562 = vadd.f32 %v1559, 1.0
    %v1563 = vrcp.pop %v1560
    %v1564 = vmul.f32 1.0, %v1563
    %v1565 = vrcp.pop %v1561
    %v1566 = vmul.f32 1.0, %v1565
    %v1567 = vrcp.pop %v1562
    %v1568 = vmul.f32 1.0, %v1567
    %v1569 = vtanh.pop %v1550
    %v1570 = vmul.f32 %v1566, %v1397
    %v1571 = vmul.f32 %v1564, %v1569
    %v1572 = vadd.f32 %v1570, %v1571
    %v1573 = vtanh.pop %v1572
    %v1574 = vmul.f32 %v1568, %v1573
    %1575 = vst [vmem:[#allocation3 + $0x28] sm:$0xff] %v1574
    %v1576 = vld [vmem:[#allocation2 + $0xc0] sm:$0xff]
    %v1577 = vld [vmem:[#allocation2 + $0xc8] sm:$0xff]
    %v1578 = vld [vmem:[#allocation2 + $0xd0] sm:$0xff]
    %v1579 = vld [vmem:[#allocation2 + $0xd8] sm:$0xff]
    %1580 = vmatprep.subr.mxu0 %v461
    %1581 = vmatpush1.msra.mxu0 %v460
    %1582 = vmatprep.subr.mxu0 %v465
    %1583 = vmatpush1.msra.mxu0 %v464
    %1584 = vmatprep.subr.mxu0 %v469
    %1585 = vmatpush1.msra.mxu0 %v468
    %1586 = vmatprep.subr.mxu0 %v473
    %1587 = vmatpush1.msra.mxu0 %v472
    %1588 = vmatprep.subr.mxu0 %v477
    %1589 = vmatpush1.msra.mxu0 %v476
    %1590 = vmatprep.subr.mxu0 %v481
    %1591 = vmatpush1.msra.mxu0 %v480
    %1592 = vmatprep.subr.mxu0 %v485
    %1593 = vmatpush1.msra.mxu0 %v484
    %1594 = vmatprep.subr.mxu0 %v489
    %1595 = vmatpush1.msra.mxu0 %v488
    %1596 = vmatprep.subr.mxu0 %v493
    %1597 = vmatpush1.msra.mxu0 %v492
    %1598 = vmatprep.subr.mxu0 %v497
    %1599 = vmatpush1.msra.mxu0 %v496
    %1600 = vmatprep.subr.mxu0 %v501
    %1601 = vmatpush1.msra.mxu0 %v500
    %1602 = vmatprep.subr.mxu0 %v505
    %1603 = vmatpush1.msra.mxu0 %v504
    %1604 = vmatprep.subr.mxu0 %v509
    %1605 = vmatpush1.msra.mxu0 %v508
    %1606 = vmatprep.subr.mxu0 %v513
    %1607 = vmatpush1.msra.mxu0 %v512
    %1608 = vmatprep.subr.mxu0 %v517
    %1609 = vmatpush1.msra.mxu0 %v516
    %1610 = vmatprep.subr.mxu0 %v521
    %1611 = vmatpush1.msra.mxu0 %v520
    %1612 = vmatprep.subr.mxu0 0.0
    %1613 = vmatpush1.msra.mxu0 0.0
    %1614 = vmatprep.subr.mxu0 0.0
    %1615 = vmatpush1.msra.mxu0 0.0
    %1616 = vmatprep.subr.mxu0 0.0
    %1617 = vmatpush1.msra.mxu0 0.0
    %1618 = vmatprep.subr.mxu0 0.0
    %1619 = vmatpush1.msra.mxu0 0.0
    %1620 = vmatprep.subr.mxu0 0.0
    %1621 = vmatpush1.msra.mxu0 0.0
    %1622 = vmatprep.subr.mxu0 0.0
    %1623 = vmatpush1.msra.mxu0 0.0
    %1624 = vmatprep.subr.mxu0 0.0
    %1625 = vmatpush1.msra.mxu0 0.0
    %1626 = vmatprep.subr.mxu0 0.0
    %1627 = vmatpush1.msra.mxu0 0.0
    %1628 = vmatprep.subr.mxu0 0.0
    %1629 = vmatpush1.msra.mxu0 0.0
    %1630 = vmatprep.subr.mxu0 0.0
    %1631 = vmatpush1.msra.mxu0 0.0
    %1632 = vmatprep.subr.mxu0 0.0
    %1633 = vmatpush1.msra.mxu0 0.0
    %1634 = vmatprep.subr.mxu0 0.0
    %1635 = vmatpush1.msra.mxu0 0.0
    %1636 = vmatprep.subr.mxu0 0.0
    %1637 = vmatpush1.msra.mxu0 0.0
    %1638 = vmatprep.subr.mxu0 0.0
    %1639 = vmatpush1.msra.mxu0 0.0
    %1640 = vmatprep.subr.mxu0 0.0
    %1641 = vmatpush1.msra.mxu0 0.0
    %1642 = vmatprep.subr.mxu0 0.0
    %1643 = vmatpush1.msra.mxu0 0.0
    %1644 = vmatprep.mubr.f32.mxu0 0.0
    %1645 = vmatmul.mubr.f32.gmra.mrb[0].mxu0 %v1574
    %v1646 = vpop.f32.mrb[0].mxu0
    %v1647 = vadd.f32 0.0, %v1646
    %v1648 = vpop.f32.mrb[0].mxu0
    %v1649 = vadd.f32 0.0, %v1648
    %1650 = vdwg.mxu0
    %1651 = vmatprep.subr.mxu0 %v463
    %1652 = vmatpush1.msra.mxu0 %v462
    %1653 = vmatprep.subr.mxu0 %v467
    %1654 = vmatpush1.msra.mxu0 %v466
    %1655 = vmatprep.subr.mxu0 %v471
    %1656 = vmatpush1.msra.mxu0 %v470
    %1657 = vmatprep.subr.mxu0 %v475
    %1658 = vmatpush1.msra.mxu0 %v474
    %1659 = vmatprep.subr.mxu0 %v479
    %1660 = vmatpush1.msra.mxu0 %v478
    %1661 = vmatprep.subr.mxu0 %v483
    %1662 = vmatpush1.msra.mxu0 %v482
    %1663 = vmatprep.subr.mxu0 %v487
    %1664 = vmatpush1.msra.mxu0 %v486
    %1665 = vmatprep.subr.mxu0 %v491
    %1666 = vmatpush1.msra.mxu0 %v490
    %1667 = vmatprep.subr.mxu0 %v495
    %1668 = vmatpush1.msra.mxu0 %v494
    %1669 = vmatprep.subr.mxu0 %v499
    %1670 = vmatpush1.msra.mxu0 %v498
    %1671 = vmatprep.subr.mxu0 %v503
    %1672 = vmatpush1.msra.mxu0 %v502
    %1673 = vmatprep.subr.mxu0 %v507
    %1674 = vmatpush1.msra.mxu0 %v506
    %1675 = vmatprep.subr.mxu0 %v511
    %1676 = vmatpush1.msra.mxu0 %v510
    %1677 = vmatprep.subr.mxu0 %v515
    %1678 = vmatpush1.msra.mxu0 %v514
    %1679 = vmatprep.subr.mxu0 %v519
    %1680 = vmatpush1.msra.mxu0 %v518
    %1681 = vmatprep.subr.mxu0 %v523
    %1682 = vmatpush1.msra.mxu0 %v522
    %1683 = vmatprep.subr.mxu0 0.0
    %1684 = vmatpush1.msra.mxu0 0.0
    %1685 = vmatprep.subr.mxu0 0.0
    %1686 = vmatpush1.msra.mxu0 0.0
    %1687 = vmatprep.subr.mxu0 0.0
    %1688 = vmatpush1.msra.mxu0 0.0
    %1689 = vmatprep.subr.mxu0 0.0
    %1690 = vmatpush1.msra.mxu0 0.0
    %1691 = vmatprep.subr.mxu0 0.0
    %1692 = vmatpush1.msra.mxu0 0.0
    %1693 = vmatprep.subr.mxu0 0.0
    %1694 = vmatpush1.msra.mxu0 0.0
    %1695 = vmatprep.subr.mxu0 0.0
    %1696 = vmatpush1.msra.mxu0 0.0
    %1697 = vmatprep.subr.mxu0 0.0
    %1698 = vmatpush1.msra.mxu0 0.0
    %1699 = vmatprep.subr.mxu0 0.0
    %1700 = vmatpush1.msra.mxu0 0.0
    %1701 = vmatprep.subr.mxu0 0.0
    %1702 = vmatpush1.msra.mxu0 0.0
    %1703 = vmatprep.subr.mxu0 0.0
    %1704 = vmatpush1.msra.mxu0 0.0
    %1705 = vmatprep.subr.mxu0 0.0
    %1706 = vmatpush1.msra.mxu0 0.0
    %1707 = vmatprep.subr.mxu0 0.0
    %1708 = vmatpush1.msra.mxu0 0.0
    %1709 = vmatprep.subr.mxu0 0.0
    %1710 = vmatpush1.msra.mxu0 0.0
    %1711 = vmatprep.subr.mxu0 0.0
    %1712 = vmatpush1.msra.mxu0 0.0
    %1713 = vmatprep.subr.mxu0 0.0
    %1714 = vmatpush1.msra.mxu0 0.0
    %1715 = vmatprep.mubr.f32.mxu0 0.0
    %1716 = vmatmul.mubr.f32.gmra.mrb[0].mxu0 %v1574
    %v1717 = vpop.f32.mrb[0].mxu0
    %v1718 = vadd.f32 0.0, %v1717
    %v1719 = vpop.f32.mrb[0].mxu0
    %v1720 = vadd.f32 0.0, %v1719
    %1721 = vdwg.mxu0
    %v1722 = vadd.f32 %v1576, %v1647
    %v1723 = vadd.f32 %v1577, %v1649
    %v1724 = vadd.f32 %v1578, %v1718
    %v1725 = vadd.f32 %v1579, %v1720
    %v1726 = vxor.u32 %v1722, 2147483648
    %v1727 = vxor.u32 %v1723, 2147483648
    %v1728 = vxor.u32 %v1724, 2147483648
    %v1729 = vmul.f32 %v1726, 1.442695
    %v1730 = vpow.pop %v1729
    %v1731 = vmul.f32 %v1727, 1.442695
    %v1732 = vpow.pop %v1731
    %v1733 = vmul.f32 %v1728, 1.442695
    %v1734 = vpow.pop %v1733
    %v1735 = vadd.f32 %v1730, 1.0
    %v1736 = vadd.f32 %v1732, 1.0
    %v1737 = vadd.f32 %v1734, 1.0
    %v1738 = vrcp.pop %v1735
    %v1739 = vmul.f32 1.0, %v1738
    %v1740 = vrcp.pop %v1736
    %v1741 = vmul.f32 1.0, %v1740
    %v1742 = vrcp.pop %v1737
    %v1743 = vmul.f32 1.0, %v1742
    %v1744 = vtanh.pop %v1725
    %v1745 = vmul.f32 %v1741, %v1572
    %v1746 = vmul.f32 %v1739, %v1744
    %v1747 = vadd.f32 %v1745, %v1746
    %v1748 = vtanh.pop %v1747
    %v1749 = vmul.f32 %v1743, %v1748
    %1750 = vst [vmem:[#allocation3 + $0x30] sm:$0xff] %v1749
    %v1751 = vld [vmem:[#allocation2 + $0xe0] sm:$0xff]
    %v1752 = vld [vmem:[#allocation2 + $0xe8] sm:$0xff]
    %v1753 = vld [vmem:[#allocation2 + $0xf0] sm:$0xff]
    %v1754 = vld [vmem:[#allocation2 + $0xf8] sm:$0xff]
    %1755 = vmatprep.subr.mxu0 %v461
    %1756 = vmatpush1.msra.mxu0 %v460
    %1757 = vmatprep.subr.mxu0 %v465
    %1758 = vmatpush1.msra.mxu0 %v464
    %1759 = vmatprep.subr.mxu0 %v469
    %1760 = vmatpush1.msra.mxu0 %v468
    %1761 = vmatprep.subr.mxu0 %v473
    %1762 = vmatpush1.msra.mxu0 %v472
    %1763 = vmatprep.subr.mxu0 %v477
    %1764 = vmatpush1.msra.mxu0 %v476
    %1765 = vmatprep.subr.mxu0 %v481
    %1766 = vmatpush1.msra.mxu0 %v480
    %1767 = vmatprep.subr.mxu0 %v485
    %1768 = vmatpush1.msra.mxu0 %v484
    %1769 = vmatprep.subr.mxu0 %v489
    %1770 = vmatpush1.msra.mxu0 %v488
    %1771 = vmatprep.subr.mxu0 %v493
    %1772 = vmatpush1.msra.mxu0 %v492
    %1773 = vmatprep.subr.mxu0 %v497
    %1774 = vmatpush1.msra.mxu0 %v496
    %1775 = vmatprep.subr.mxu0 %v501
    %1776 = vmatpush1.msra.mxu0 %v500
    %1777 = vmatprep.subr.mxu0 %v505
    %1778 = vmatpush1.msra.mxu0 %v504
    %1779 = vmatprep.subr.mxu0 %v509
    %1780 = vmatpush1.msra.mxu0 %v508
    %1781 = vmatprep.subr.mxu0 %v513
    %1782 = vmatpush1.msra.mxu0 %v512
    %1783 = vmatprep.subr.mxu0 %v517
    %1784 = vmatpush1.msra.mxu0 %v516
    %1785 = vmatprep.subr.mxu0 %v521
    %1786 = vmatpush1.msra.mxu0 %v520
    %1787 = vmatprep.subr.mxu0 0.0
    %1788 = vmatpush1.msra.mxu0 0.0
    %1789 = vmatprep.subr.mxu0 0.0
    %1790 = vmatpush1.msra.mxu0 0.0
    %1791 = vmatprep.subr.mxu0 0.0
    %1792 = vmatpush1.msra.mxu0 0.0
    %1793 = vmatprep.subr.mxu0 0.0
    %1794 = vmatpush1.msra.mxu0 0.0
    %1795 = vmatprep.subr.mxu0 0.0
    %1796 = vmatpush1.msra.mxu0 0.0
    %1797 = vmatprep.subr.mxu0 0.0
    %1798 = vmatpush1.msra.mxu0 0.0
    %1799 = vmatprep.subr.mxu0 0.0
    %1800 = vmatpush1.msra.mxu0 0.0
    %1801 = vmatprep.subr.mxu0 0.0
    %1802 = vmatpush1.msra.mxu0 0.0
    %1803 = vmatprep.subr.mxu0 0.0
    %1804 = vmatpush1.msra.mxu0 0.0
    %1805 = vmatprep.subr.mxu0 0.0
    %1806 = vmatpush1.msra.mxu0 0.0
    %1807 = vmatprep.subr.mxu0 0.0
    %1808 = vmatpush1.msra.mxu0 0.0
    %1809 = vmatprep.subr.mxu0 0.0
    %1810 = vmatpush1.msra.mxu0 0.0
    %1811 = vmatprep.subr.mxu0 0.0
    %1812 = vmatpush1.msra.mxu0 0.0
    %1813 = vmatprep.subr.mxu0 0.0
    %1814 = vmatpush1.msra.mxu0 0.0
    %1815 = vmatprep.subr.mxu0 0.0
    %1816 = vmatpush1.msra.mxu0 0.0
    %1817 = vmatprep.subr.mxu0 0.0
    %1818 = vmatpush1.msra.mxu0 0.0
    %1819 = vmatprep.mubr.f32.mxu0 0.0
    %1820 = vmatmul.mubr.f32.gmra.mrb[0].mxu0 %v1749
    %v1821 = vpop.f32.mrb[0].mxu0
    %v1822 = vadd.f32 0.0, %v1821
    %v1823 = vpop.f32.mrb[0].mxu0
    %v1824 = vadd.f32 0.0, %v1823
    %1825 = vdwg.mxu0
    %1826 = vmatprep.subr.mxu0 %v463
    %1827 = vmatpush1.msra.mxu0 %v462
    %1828 = vmatprep.subr.mxu0 %v467
    %1829 = vmatpush1.msra.mxu0 %v466
    %1830 = vmatprep.subr.mxu0 %v471
    %1831 = vmatpush1.msra.mxu0 %v470
    %1832 = vmatprep.subr.mxu0 %v475
    %1833 = vmatpush1.msra.mxu0 %v474
    %1834 = vmatprep.subr.mxu0 %v479
    %1835 = vmatpush1.msra.mxu0 %v478
    %1836 = vmatprep.subr.mxu0 %v483
    %1837 = vmatpush1.msra.mxu0 %v482
    %1838 = vmatprep.subr.mxu0 %v487
    %1839 = vmatpush1.msra.mxu0 %v486
    %1840 = vmatprep.subr.mxu0 %v491
    %1841 = vmatpush1.msra.mxu0 %v490
    %1842 = vmatprep.subr.mxu0 %v495
    %1843 = vmatpush1.msra.mxu0 %v494
    %1844 = vmatprep.subr.mxu0 %v499
    %1845 = vmatpush1.msra.mxu0 %v498
    %1846 = vmatprep.subr.mxu0 %v503
    %1847 = vmatpush1.msra.mxu0 %v502
    %1848 = vmatprep.subr.mxu0 %v507
    %1849 = vmatpush1.msra.mxu0 %v506
    %1850 = vmatprep.subr.mxu0 %v511
    %1851 = vmatpush1.msra.mxu0 %v510
    %1852 = vmatprep.subr.mxu0 %v515
    %1853 = vmatpush1.msra.mxu0 %v514
    %1854 = vmatprep.subr.mxu0 %v519
    %1855 = vmatpush1.msra.mxu0 %v518
    %1856 = vmatprep.subr.mxu0 %v523
    %1857 = vmatpush1.msra.mxu0 %v522
    %1858 = vmatprep.subr.mxu0 0.0
    %1859 = vmatpush1.msra.mxu0 0.0
    %1860 = vmatprep.subr.mxu0 0.0
    %1861 = vmatpush1.msra.mxu0 0.0
    %1862 = vmatprep.subr.mxu0 0.0
    %1863 = vmatpush1.msra.mxu0 0.0
    %1864 = vmatprep.subr.mxu0 0.0
    %1865 = vmatpush1.msra.mxu0 0.0
    %1866 = vmatprep.subr.mxu0 0.0
    %1867 = vmatpush1.msra.mxu0 0.0
    %1868 = vmatprep.subr.mxu0 0.0
    %1869 = vmatpush1.msra.mxu0 0.0
    %1870 = vmatprep.subr.mxu0 0.0
    %1871 = vmatpush1.msra.mxu0 0.0
    %1872 = vmatprep.subr.mxu0 0.0
    %1873 = vmatpush1.msra.mxu0 0.0
    %1874 = vmatprep.subr.mxu0 0.0
    %1875 = vmatpush1.msra.mxu0 0.0
    %1876 = vmatprep.subr.mxu0 0.0
    %1877 = vmatpush1.msra.mxu0 0.0
    %1878 = vmatprep.subr.mxu0 0.0
    %1879 = vmatpush1.msra.mxu0 0.0
    %1880 = vmatprep.subr.mxu0 0.0
    %1881 = vmatpush1.msra.mxu0 0.0
    %1882 = vmatprep.subr.mxu0 0.0
    %1883 = vmatpush1.msra.mxu0 0.0
    %1884 = vmatprep.subr.mxu0 0.0
    %1885 = vmatpush1.msra.mxu0 0.0
    %1886 = vmatprep.subr.mxu0 0.0
    %1887 = vmatpush1.msra.mxu0 0.0
    %1888 = vmatprep.subr.mxu0 0.0
    %1889 = vmatpush1.msra.mxu0 0.0
    %1890 = vmatprep.mubr.f32.mxu0 0.0
    %1891 = vmatmul.mubr.f32.gmra.mrb[0].mxu0 %v1749
    %v1892 = vpop.f32.mrb[0].mxu0
    %v1893 = vadd.f32 0.0, %v1892
    %v1894 = vpop.f32.mrb[0].mxu0
    %v1895 = vadd.f32 0.0, %v1894
    %1896 = vdwg.mxu0
    %v1897 = vadd.f32 %v1751, %v1822
    %v1898 = vadd.f32 %v1752, %v1824
    %v1899 = vadd.f32 %v1753, %v1893
    %v1900 = vadd.f32 %v1754, %v1895
    %v1901 = vxor.u32 %v1897, 2147483648
    %v1902 = vxor.u32 %v1898, 2147483648
    %v1903 = vxor.u32 %v1899, 2147483648
    %v1904 = vmul.f32 %v1901, 1.442695
    %v1905 = vpow.pop %v1904
    %v1906 = vmul.f32 %v1902, 1.442695
    %v1907 = vpow.pop %v1906
    %v1908 = vmul.f32 %v1903, 1.442695
    %v1909 = vpow.pop %v1908
    %v1910 = vadd.f32 %v1905, 1.0
    %v1911 = vadd.f32 %v1907, 1.0
    %v1912 = vadd.f32 %v1909, 1.0
    %v1913 = vrcp.pop %v1910
    %v1914 = vmul.f32 1.0, %v1913
    %v1915 = vrcp.pop %v1911
    %v1916 = vmul.f32 1.0, %v1915
    %v1917 = vrcp.pop %v1912
    %v1918 = vmul.f32 1.0, %v1917
    %v1919 = vtanh.pop %v1900
    %v1920 = vmul.f32 %v1916, %v1747
    %v1921 = vmul.f32 %v1914, %v1919
    %v1922 = vadd.f32 %v1920, %v1921
    %v1923 = vtanh.pop %v1922
    %v1924 = vmul.f32 %v1918, %v1923
    %1925 = vst [vmem:[#allocation3 + $0x38] sm:$0xff] %v1924
    %1926 = vst [vmem:[#allocation16] sm:$0xff] %v1924
    %1927 = vst [vmem:[#allocation18] sm:$0xff] %v1922
    %v1928 = vld [vmem:[#allocation3] sm:$0xff]
    %v1929 = vld [vmem:[#allocation3 + $0x8] sm:$0xff]
    %v1930 = vld [vmem:[#allocation3 + $0x10] sm:$0xff]
    %v1931 = vld [vmem:[#allocation3 + $0x18] sm:$0xff]
    %v1932 = vld [vmem:[#allocation3 + $0x20] sm:$0xff]
    %v1933 = vld [vmem:[#allocation3 + $0x28] sm:$0xff]
    %v1934 = vld [vmem:[#allocation3 + $0x30] sm:$0xff]
    %v1935 = vld [vmem:[#allocation3 + $0x38] sm:$0xff]
    %v1936 = vlaneseq
    %v1937 = vshrl.u32 %v1936, 7
    %v1938 = vadd.s32 %v1937, 8
    %v1939 = vadd.s32 %v1937, 16
    %v1940 = vadd.s32 %v1937, 24
    %v1941 = vadd.s32 %v1937, 32
    %v1942 = vadd.s32 %v1937, 40
    %v1943 = vadd.s32 %v1937, 48
    %v1944 = vadd.s32 %v1937, 56
    %vm1945 = vcmp.lt.s32.totalorder %v1937, 0
    %v1946 = vsub.s32 0, %v1937
    %v1947 = vsel %vm1945, %v1946, %v1937
    %v1948 = vshrl.u32 %v1947, 3
    %v1949 = vand.u32 %v1947, 7
    %v1950 = vsub.s32 0, %v1949
    %v1951 = vsel %vm1945, %v1950, %v1949
    %vm1952 = vcmp.lt.s32.totalorder %v1938, 0
    %v1953 = vsub.s32 0, %v1938
    %v1954 = vsel %vm1952, %v1953, %v1938
    %v1955 = vshrl.u32 %v1954, 3
    %v1956 = vand.u32 %v1954, 7
    %v1957 = vsub.s32 0, %v1956
    %v1958 = vsel %vm1952, %v1957, %v1956
    %vm1959 = vcmp.lt.s32.totalorder %v1939, 0
    %v1960 = vsub.s32 0, %v1939
    %v1961 = vsel %vm1959, %v1960, %v1939
    %v1962 = vshrl.u32 %v1961, 3
    %v1963 = vand.u32 %v1961, 7
    %v1964 = vsub.s32 0, %v1963
    %v1965 = vsel %vm1959, %v1964, %v1963
    %vm1966 = vcmp.lt.s32.totalorder %v1940, 0
    %v1967 = vsub.s32 0, %v1940
    %v1968 = vsel %vm1966, %v1967, %v1940
    %v1969 = vshrl.u32 %v1968, 3
    %v1970 = vand.u32 %v1968, 7
    %v1971 = vsub.s32 0, %v1970
    %v1972 = vsel %vm1966, %v1971, %v1970
    %vm1973 = vcmp.lt.s32.totalorder %v1941, 0
    %v1974 = vsub.s32 0, %v1941
    %v1975 = vsel %vm1973, %v1974, %v1941
    %v1976 = vshrl.u32 %v1975, 3
    %v1977 = vand.u32 %v1975, 7
    %v1978 = vsub.s32 0, %v1977
    %v1979 = vsel %vm1973, %v1978, %v1977
    %vm1980 = vcmp.lt.s32.totalorder %v1942, 0
    %v1981 = vsub.s32 0, %v1942
    %v1982 = vsel %vm1980, %v1981, %v1942
    %v1983 = vshrl.u32 %v1982, 3
    %v1984 = vand.u32 %v1982, 7
    %v1985 = vsub.s32 0, %v1984
    %v1986 = vsel %vm1980, %v1985, %v1984
    %vm1987 = vcmp.lt.s32.totalorder %v1943, 0
    %v1988 = vsub.s32 0, %v1943
    %v1989 = vsel %vm1987, %v1988, %v1943
    %v1990 = vshrl.u32 %v1989, 3
    %v1991 = vand.u32 %v1989, 7
    %v1992 = vsub.s32 0, %v1991
    %v1993 = vsel %vm1987, %v1992, %v1991
    %vm1994 = vcmp.lt.s32.totalorder %v1944, 0
    %v1995 = vsub.s32 0, %v1944
    %v1996 = vsel %vm1994, %v1995, %v1944
    %v1997 = vshrl.u32 %v1996, 3
    %v1998 = vand.u32 %v1996, 7
    %v1999 = vsub.s32 0, %v1998
    %v2000 = vsel %vm1994, %v1999, %v1998
    %vm2001 = vcmp.ne.s32.totalorder %v1951, 0
    %vm2002 = vcmp.ne.s32.totalorder %v1958, 0
    %vm2003 = vcmp.ne.s32.totalorder %v1965, 0
    %vm2004 = vcmp.ne.s32.totalorder %v1972, 0
    %vm2005 = vcmp.ne.s32.totalorder %v1979, 0
    %vm2006 = vcmp.ne.s32.totalorder %v1986, 0
    %vm2007 = vcmp.ne.s32.totalorder %v1993, 0
    %vm2008 = vcmp.ne.s32.totalorder %v2000, 0
    %vm2009 = vcmp.lt.s32.totalorder %v1951, 0
    %vm2010 = vcmp.lt.s32.totalorder %v1958, 0
    %vm2011 = vcmp.lt.s32.totalorder %v1965, 0
    %vm2012 = vcmp.lt.s32.totalorder %v1972, 0
    %vm2013 = vcmp.lt.s32.totalorder %v1979, 0
    %vm2014 = vcmp.lt.s32.totalorder %v1986, 0
    %vm2015 = vcmp.lt.s32.totalorder %v1993, 0
    %vm2016 = vcmp.lt.s32.totalorder %v2000, 0
    %vm2017 = vmand %vm2009, %vm2001
    %vm2018 = vmand %vm2010, %vm2002
    %vm2019 = vmand %vm2011, %vm2003
    %vm2020 = vmand %vm2012, %vm2004
    %vm2021 = vmand %vm2013, %vm2005
    %vm2022 = vmand %vm2014, %vm2006
    %vm2023 = vmand %vm2015, %vm2007
    %vm2024 = vmand %vm2016, %vm2008
    %v2025 = vadd.s32 %v1951, 8
    %v2026 = vadd.s32 %v1958, 8
    %v2027 = vadd.s32 %v1965, 8
    %v2028 = vadd.s32 %v1972, 8
    %v2029 = vadd.s32 %v1979, 8
    %v2030 = vadd.s32 %v1986, 8
    %v2031 = vadd.s32 %v1993, 8
    %v2032 = vadd.s32 %v2000, 8
    %v2033 = vsel %vm2017, %v2025, %v1951
    %v2034 = vsel %vm2018, %v2026, %v1958
    %v2035 = vsel %vm2019, %v2027, %v1965
    %v2036 = vsel %vm2020, %v2028, %v1972
    %v2037 = vsel %vm2021, %v2029, %v1979
    %v2038 = vsel %vm2022, %v2030, %v1986
    %v2039 = vsel %vm2023, %v2031, %v1993
    %v2040 = vsel %vm2024, %v2032, %v2000
    %vm2041 = vcmp.lt.s32.totalorder %v2033, 2
    %vm2042 = vcmp.lt.s32.totalorder %v2034, 2
    %vm2043 = vcmp.lt.s32.totalorder %v2035, 2
    %vm2044 = vcmp.lt.s32.totalorder %v2036, 2
    %vm2045 = vcmp.lt.s32.totalorder %v2037, 2
    %vm2046 = vcmp.lt.s32.totalorder %v2038, 2
    %vm2047 = vcmp.lt.s32.totalorder %v2039, 2
    %vm2048 = vcmp.lt.s32.totalorder %v2040, 2
    %v2049 = vsel %vm2041, 1, 0
    %v2050 = vsel %vm2042, 1, 0
    %v2051 = vsel %vm2043, 1, 0
    %v2052 = vsel %vm2044, 1, 0
    %v2053 = vsel %vm2045, 1, 0
    %v2054 = vsel %vm2046, 1, 0
    %v2055 = vsel %vm2047, 1, 0
    %v2056 = vsel %vm2048, 1, 0
    %vm2057 = vcmp.eq.s32.totalorder %v2049, 1
    %vm2058 = vcmp.eq.s32.totalorder %v2050, 1
    %vm2059 = vcmp.eq.s32.totalorder %v2051, 1
    %vm2060 = vcmp.eq.s32.totalorder %v2052, 1
    %vm2061 = vcmp.eq.s32.totalorder %v2053, 1
    %vm2062 = vcmp.eq.s32.totalorder %v2054, 1
    %vm2063 = vcmp.eq.s32.totalorder %v2055, 1
    %vm2064 = vcmp.eq.s32.totalorder %v2056, 1
    %v2065 = vsel %vm2057, %v1928, 0.0
    %v2066 = vsel %vm2058, %v1929, 0.0
    %v2067 = vsel %vm2059, %v1930, 0.0
    %v2068 = vsel %vm2060, %v1931, 0.0
    %v2069 = vsel %vm2061, %v1932, 0.0
    %v2070 = vsel %vm2062, %v1933, 0.0
    %v2071 = vsel %vm2063, %v1934, 0.0
    %v2072 = vsel %vm2064, %v1935, 0.0
    %v2073 = vadd.f32 %v2065, %v2066
    %v2074 = vadd.f32 %v2073, %v2067
    %v2075 = vadd.f32 %v2074, %v2068
    %v2076 = vadd.f32 %v2075, %v2069
    %v2077 = vadd.f32 %v2076, %v2070
    %v2078 = vadd.f32 %v2077, %v2071
    %v2079 = vadd.f32 %v2078, %v2072
    %v2080 = vrot.slane %v2079, 4
    %v2081 = vadd.f32 %v2079, %v2080
    %v2082 = vrot.slane %v2081, 2
    %v2083 = vadd.f32 %v2081, %v2082
    %v2084 = vrot.slane %v2083, 1
    %v2085 = vadd.f32 %v2083, %v2084
    %v2086 = vmul.f32 %v2065, %v2065
    %v2087 = vmul.f32 %v2066, %v2066
    %v2088 = vmul.f32 %v2067, %v2067
    %v2089 = vmul.f32 %v2068, %v2068
    %v2090 = vmul.f32 %v2069, %v2069
    %v2091 = vmul.f32 %v2070, %v2070
    %v2092 = vmul.f32 %v2071, %v2071
    %v2093 = vmul.f32 %v2072, %v2072
    %v2094 = vadd.f32 %v2086, %v2087
    %v2095 = vadd.f32 %v2094, %v2088
    %v2096 = vadd.f32 %v2095, %v2089
    %v2097 = vadd.f32 %v2096, %v2090
    %v2098 = vadd.f32 %v2097, %v2091
    %v2099 = vadd.f32 %v2098, %v2092
    %v2100 = vadd.f32 %v2099, %v2093
    %v2101 = vrot.slane %v2100, 4
    %v2102 = vadd.f32 %v2100, %v2101
    %v2103 = vrot.slane %v2102, 2
    %v2104 = vadd.f32 %v2102, %v2103
    %v2105 = vrot.slane %v2104, 1
    %v2106 = vadd.f32 %v2104, %v2105
    %v2107 = vmul.f32 %v2085, 0.0625
    %v2108 = vmul.f32 %v2106, 0.0625
    %v2109 = vmul.f32 %v2107, %v2107
    %v2110 = vsub.f32 %v2108, %v2109
    %v2111 = vmax.f32 %v2110, 0.0
    %v2112 = vld [vmem:[#allocation12 + $0x1] sm:$0x1]
    %v2113 = vld [vmem:[#allocation12 + $0x2] sm:$0x1]
    %v2114 = vld [vmem:[#allocation12 + $0x3] sm:$0x1]
    %v2115 = vadd.f32 %v2111, 1e-05
    %v2116 = vrsqrt.pop %v2115
    %v2117 = vmul.f32 %v2112, %v2116
    %v2118 = vld [vmem:[#allocation13] sm:$0xff]
    %v2119 = vld [vmem:[#allocation13 + $0x8] sm:$0xff]
    %v2120 = vld [vmem:[#allocation13 + $0x10] sm:$0xff]
    %v2121 = vld [vmem:[#allocation13 + $0x18] sm:$0xff]
    %v2122 = vld [vmem:[#allocation13 + $0x20] sm:$0xff]
    %v2123 = vld [vmem:[#allocation13 + $0x28] sm:$0xff]
    %v2124 = vld [vmem:[#allocation13 + $0x30] sm:$0xff]
    %v2125 = vld [vmem:[#allocation13 + $0x38] sm:$0xff]
    %v2126 = vld [vmem:[#allocation13 + $0x40] sm:$0xff]
    %v2127 = vld [vmem:[#allocation13 + $0x48] sm:$0xff]
    %v2128 = vld [vmem:[#allocation13 + $0x50] sm:$0xff]
    %v2129 = vld [vmem:[#allocation13 + $0x58] sm:$0xff]
    %v2130 = vld [vmem:[#allocation13 + $0x60] sm:$0xff]
    %v2131 = vld [vmem:[#allocation13 + $0x68] sm:$0xff]
    %v2132 = vld [vmem:[#allocation13 + $0x70] sm:$0xff]
    %v2133 = vld [vmem:[#allocation13 + $0x78] sm:$0xff]
    %v2134 = vmul.f32 %v2107, %v2117
    %v2135 = vsub.f32 %v2113, %v2134
    %2136 = vmatprep.subr.mxu0 0.0
    %2137 = vmatpush1.msra.mxu0 %v2118
    %2138 = vmatprep.subr.mxu0 0.0
    %2139 = vmatpush1.msra.mxu0 %v2119
    %2140 = vmatprep.subr.mxu0 0.0
    %2141 = vmatpush1.msra.mxu0 %v2120
    %2142 = vmatprep.subr.mxu0 0.0
    %2143 = vmatpush1.msra.mxu0 %v2121
    %2144 = vmatprep.subr.mxu0 0.0
    %2145 = vmatpush1.msra.mxu0 %v2122
    %2146 = vmatprep.subr.mxu0 0.0
    %2147 = vmatpush1.msra.mxu0 %v2123
    %2148 = vmatprep.subr.mxu0 0.0
    %2149 = vmatpush1.msra.mxu0 %v2124
    %2150 = vmatprep.subr.mxu0 0.0
    %2151 = vmatpush1.msra.mxu0 %v2125
    %2152 = vmatprep.subr.mxu0 0.0
    %2153 = vmatpush1.msra.mxu0 %v2126
    %2154 = vmatprep.subr.mxu0 0.0
    %2155 = vmatpush1.msra.mxu0 %v2127
    %2156 = vmatprep.subr.mxu0 0.0
    %2157 = vmatpush1.msra.mxu0 %v2128
    %2158 = vmatprep.subr.mxu0 0.0
    %2159 = vmatpush1.msra.mxu0 %v2129
    %2160 = vmatprep.subr.mxu0 0.0
    %2161 = vmatpush1.msra.mxu0 %v2130
    %2162 = vmatprep.subr.mxu0 0.0
    %2163 = vmatpush1.msra.mxu0 %v2131
    %2164 = vmatprep.subr.mxu0 0.0
    %2165 = vmatpush1.msra.mxu0 %v2132
    %2166 = vmatprep.subr.mxu0 0.0
    %2167 = vmatpush1.msra.mxu0 %v2133
    %2168 = vmatprep.subr.mxu0 0.0
    %2169 = vmatpush1.msra.mxu0 0.0
    %2170 = vmatprep.subr.mxu0 0.0
    %2171 = vmatpush1.msra.mxu0 0.0
    %2172 = vmatprep.subr.mxu0 0.0
    %2173 = vmatpush1.msra.mxu0 0.0
    %2174 = vmatprep.subr.mxu0 0.0
    %2175 = vmatpush1.msra.mxu0 0.0
    %2176 = vmatprep.subr.mxu0 0.0
    %2177 = vmatpush1.msra.mxu0 0.0
    %2178 = vmatprep.subr.mxu0 0.0
    %2179 = vmatpush1.msra.mxu0 0.0
    %2180 = vmatprep.subr.mxu0 0.0
    %2181 = vmatpush1.msra.mxu0 0.0
    %2182 = vmatprep.subr.mxu0 0.0
    %2183 = vmatpush1.msra.mxu0 0.0
    %2184 = vmatprep.subr.mxu0 0.0
    %2185 = vmatpush1.msra.mxu0 0.0
    %2186 = vmatprep.subr.mxu0 0.0
    %2187 = vmatpush1.msra.mxu0 0.0
    %2188 = vmatprep.subr.mxu0 0.0
    %2189 = vmatpush1.msra.mxu0 0.0
    %2190 = vmatprep.subr.mxu0 0.0
    %2191 = vmatpush1.msra.mxu0 0.0
    %2192 = vmatprep.subr.mxu0 0.0
    %2193 = vmatpush1.msra.mxu0 0.0
    %2194 = vmatprep.subr.mxu0 0.0
    %2195 = vmatpush1.msra.mxu0 0.0
    %2196 = vmatprep.subr.mxu0 0.0
    %2197 = vmatpush1.msra.mxu0 0.0
    %2198 = vmatprep.subr.mxu0 0.0
    %2199 = vmatpush1.msra.mxu0 0.0
    %2200 = vmatprep.mubr.f32.mxu0 0.0
    %2201 = vmatmul.mubr.f32.gmra.mrb[0].mxu0 %v2135
    %v2202 = vpop.f32.mrb[0].mxu0
    %v2203 = vadd.f32 %v2114, %v2202
    %v2204 = vpop.f32.mrb[0].mxu0
    %2205 = vdwg.mxu0
    %v2206 = vlaneseq
    %v2207 = vshrl.u32 %v2206, 7
    %v2208 = vsub.s32 0, %v2207
    %v2209 = vrot.slane %v2117, %v2208
    %v2210 = vmul.f32 %v2065, %v2209
    %v2211 = vmul.f32 %v2066, %v2209
    %v2212 = vmul.f32 %v2067, %v2209
    %v2213 = vmul.f32 %v2068, %v2209
    %v2214 = vmul.f32 %v2069, %v2209
    %v2215 = vmul.f32 %v2070, %v2209
    %v2216 = vmul.f32 %v2071, %v2209
    %v2217 = vmul.f32 %v2072, %v2209
    %v2218 = vlaneseq
    %v2219 = vshrl.u32 %v2218, 7
    %v2220 = vsub.s32 0, %v2219
    %v2221 = vrot.slane %v2203, %v2220
    %2222 = vmatprep.subr.mxu0 0.0
    %2223 = vmatpush1.msra.mxu0 %v2118
    %2224 = vmatprep.subr.mxu0 0.0
    %2225 = vmatpush1.msra.mxu0 %v2119
    %2226 = vmatprep.subr.mxu0 0.0
    %2227 = vmatpush1.msra.mxu0 %v2120
    %2228 = vmatprep.subr.mxu0 0.0
    %2229 = vmatpush1.msra.mxu0 %v2121
    %2230 = vmatprep.subr.mxu0 0.0
    %2231 = vmatpush1.msra.mxu0 %v2122
    %2232 = vmatprep.subr.mxu0 0.0
    %2233 = vmatpush1.msra.mxu0 %v2123
    %2234 = vmatprep.subr.mxu0 0.0
    %2235 = vmatpush1.msra.mxu0 %v2124
    %2236 = vmatprep.subr.mxu0 0.0
    %2237 = vmatpush1.msra.mxu0 %v2125
    %2238 = vmatprep.subr.mxu0 0.0
    %2239 = vmatpush1.msra.mxu0 %v2126
    %2240 = vmatprep.subr.mxu0 0.0
    %2241 = vmatpush1.msra.mxu0 %v2127
    %2242 = vmatprep.subr.mxu0 0.0
    %2243 = vmatpush1.msra.mxu0 %v2128
    %2244 = vmatprep.subr.mxu0 0.0
    %2245 = vmatpush1.msra.mxu0 %v2129
    %2246 = vmatprep.subr.mxu0 0.0
    %2247 = vmatpush1.msra.mxu0 %v2130
    %2248 = vmatprep.subr.mxu0 0.0
    %2249 = vmatpush1.msra.mxu0 %v2131
    %2250 = vmatprep.subr.mxu0 0.0
    %2251 = vmatpush1.msra.mxu0 %v2132
    %2252 = vmatprep.subr.mxu0 0.0
    %2253 = vmatpush1.msra.mxu0 %v2133
    %2254 = vmatprep.subr.mxu0 0.0
    %2255 = vmatpush1.msra.mxu0 0.0
    %2256 = vmatprep.subr.mxu0 0.0
    %2257 = vmatpush1.msra.mxu0 0.0
    %2258 = vmatprep.subr.mxu0 0.0
    %2259 = vmatpush1.msra.mxu0 0.0
    %2260 = vmatprep.subr.mxu0 0.0
    %2261 = vmatpush1.msra.mxu0 0.0
    %2262 = vmatprep.subr.mxu0 0.0
    %2263 = vmatpush1.msra.mxu0 0.0
    %2264 = vmatprep.subr.mxu0 0.0
    %2265 = vmatpush1.msra.mxu0 0.0
    %2266 = vmatprep.subr.mxu0 0.0
    %2267 = vmatpush1.msra.mxu0 0.0
    %2268 = vmatprep.subr.mxu0 0.0
    %2269 = vmatpush1.msra.mxu0 0.0
    %2270 = vmatprep.subr.mxu0 0.0
    %2271 = vmatpush1.msra.mxu0 0.0
    %2272 = vmatprep.subr.mxu0 0.0
    %2273 = vmatpush1.msra.mxu0 0.0
    %2274 = vmatprep.subr.mxu0 0.0
    %2275 = vmatpush1.msra.mxu0 0.0
    %2276 = vmatprep.subr.mxu0 0.0
    %2277 = vmatpush1.msra.mxu0 0.0
    %2278 = vmatprep.subr.mxu0 0.0
    %2279 = vmatpush1.msra.mxu0 0.0
    %2280 = vmatprep.subr.mxu0 0.0
    %2281 = vmatpush1.msra.mxu0 0.0
    %2282 = vmatprep.subr.mxu0 0.0
    %2283 = vmatpush1.msra.mxu0 0.0
    %2284 = vmatprep.subr.mxu0 0.0
    %2285 = vmatpush1.msra.mxu0 0.0
    %2286 = vmatprep.mubr.f32.mxu0 0.0
    %2287 = vmatmul.mubr.f32.gmra.mrb[0].mxu0 %v2210
    %v2288 = vpop.f32.mrb[0].mxu0
    %v2289 = vadd.f32 %v2221, %v2288
    %v2290 = vpop.f32.mrb[0].mxu0
    %2291 = vmatprep.mubr.f32.mxu0 0.0
    %2292 = vmatmul.mubr.f32.gmra.mrb[0].mxu0 %v2211
    %v2293 = vpop.f32.mrb[0].mxu0
    %v2294 = vadd.f32 %v2221, %v2293
    %v2295 = vpop.f32.mrb[0].mxu0
    %2296 = vmatprep.mubr.f32.mxu0 0.0
    %2297 = vmatmul.mubr.f32.gmra.mrb[0].mxu0 %v2212
    %v2298 = vpop.f32.mrb[0].mxu0
    %v2299 = vadd.f32 %v2221, %v2298
    %v2300 = vpop.f32.mrb[0].mxu0
    %2301 = vmatprep.mubr.f32.mxu0 0.0
    %2302 = vmatmul.mubr.f32.gmra.mrb[0].mxu0 %v2213
    %v2303 = vpop.f32.mrb[0].mxu0
    %v2304 = vadd.f32 %v2221, %v2303
    %v2305 = vpop.f32.mrb[0].mxu0
    %2306 = vmatprep.mubr.f32.mxu0 0.0
    %2307 = vmatmul.mubr.f32.gmra.mrb[0].mxu0 %v2214
    %v2308 = vpop.f32.mrb[0].mxu0
    %v2309 = vadd.f32 %v2221, %v2308
    %v2310 = vpop.f32.mrb[0].mxu0
    %2311 = vmatprep.mubr.f32.mxu0 0.0
    %2312 = vmatmul.mubr.f32.gmra.mrb[0].mxu0 %v2215
    %v2313 = vpop.f32.mrb[0].mxu0
    %v2314 = vadd.f32 %v2221, %v2313
    %v2315 = vpop.f32.mrb[0].mxu0
    %2316 = vmatprep.mubr.f32.mxu0 0.0
    %2317 = vmatmul.mubr.f32.gmra.mrb[0].mxu0 %v2216
    %v2318 = vpop.f32.mrb[0].mxu0
    %v2319 = vadd.f32 %v2221, %v2318
    %v2320 = vpop.f32.mrb[0].mxu0
    %2321 = vmatprep.mubr.f32.mxu0 0.0
    %2322 = vmatmul.mubr.f32.gmra.mrb[0].mxu0 %v2217
    %v2323 = vpop.f32.mrb[0].mxu0
    %v2324 = vadd.f32 %v2221, %v2323
    %v2325 = vpop.f32.mrb[0].mxu0
    %2326 = vdwg.mxu0
    %2327 = vst [vmem:[#allocation15] sm:$0xff] %v2289
    %2328 = vst [vmem:[#allocation15 + $0x8] sm:$0xff] %v2294
    %2329 = vst [vmem:[#allocation15 + $0x10] sm:$0xff] %v2299
    %2330 = vst [vmem:[#allocation15 + $0x18] sm:$0xff] %v2304
    %2331 = vst [vmem:[#allocation15 + $0x20] sm:$0xff] %v2309
    %2332 = vst [vmem:[#allocation15 + $0x28] sm:$0xff] %v2314
    %2333 = vst [vmem:[#allocation15 + $0x30] sm:$0xff] %v2319
    %2334 = vst [vmem:[#allocation15 + $0x38] sm:$0xff] %v2324
    // Predicated region
    $region50: #{tpu_custom_call.1} parent=1 // pred_check
      _
    $region51: #{tpu_custom_call.1} parent=1 // pred_check_branch
      %2336 = sbr.rel (0) target = $region53
    $region52: #{tpu_custom_call.1} parent=1 // pred_region
      %s2338 = ssub.s32 1024, 1024
      %2339 = vsyncadd [#allocation6], %s2338
      %s2340 = sshll.u32 [#allocation15], 4
      %s2341 = int_to_ptr.vmem [resolvable:$true] %s2340
      %2346 = dma.vmem_to_hbm [thread:$0]  %s2341, 1024, %s6, [#allocation6], 128, 128, 8
    $region53: #{tpu_custom_call.1} parent=1 // pred_fallthru
      _
    // Predicated region
    $region54: #{tpu_custom_call.1} parent=1 // pred_check
      _
    $region55: #{tpu_custom_call.1} parent=1 // pred_check_branch
      %2348 = sbr.rel (0) target = $region57
    $region56: #{tpu_custom_call.1} parent=1 // pred_region
      %s2350 = ssub.s32 128, 128
      %2351 = vsyncadd [#allocation17], %s2350
      %s2353 = sshll.u32 [#allocation16], 4
      %s2354 = int_to_ptr.vmem [resolvable:$true] %s2353
      %2356 = dma.vmem_to_hbm [thread:$0]  %s2354, 128, %s7, [#allocation17]
    $region57: #{tpu_custom_call.1} parent=1 // pred_fallthru
      _
    // Predicated region
    $region58: #{tpu_custom_call.1} parent=1 // pred_check
      _
    $region59: #{tpu_custom_call.1} parent=1 // pred_check_branch
      %2358 = sbr.rel (0) target = $region61
    $region60: #{tpu_custom_call.1} parent=1 // pred_region
      %s2360 = ssub.s32 128, 128
      %2361 = vsyncadd [#allocation17], %s2360
      %s2363 = sshll.u32 [#allocation18], 4
      %s2364 = int_to_ptr.vmem [resolvable:$true] %s2363
      %2366 = dma.vmem_to_hbm [thread:$0]  %s2364, 128, %s8, [#allocation17]
    $region61: #{tpu_custom_call.1} parent=1 // pred_fallthru
      _
    // Predicated region
    $region62: #{tpu_custom_call.1} parent=1 // pred_check
      _
    $region63: #{tpu_custom_call.1} parent=1 // pred_check_branch
      %2368 = sbr.rel (0) target = $region65
    $region64: #{tpu_custom_call.1} parent=1 // pred_region
      %2369 = dma.done [#allocation6], 1024
    $region65: #{tpu_custom_call.1} parent=1 // pred_fallthru
      _
    // Predicated region
    $region66: #{tpu_custom_call.1} parent=1 // pred_check
      _
    $region67: #{tpu_custom_call.1} parent=1 // pred_check_branch
      %2371 = sbr.rel (0) target = $region69
    $region68: #{tpu_custom_call.1} parent=1 // pred_region
      %2372 = dma.done [#allocation17], 128
    $region69: #{tpu_custom_call.1} parent=1 // pred_fallthru
      _
    // Predicated region
    $region70: #{tpu_custom_call.1} parent=1 // pred_check
      _
    $region71: #{tpu_custom_call.1} parent=1 // pred_check_branch
      %2374 = sbr.rel (0) target = $region73
    $region72: #{tpu_custom_call.1} parent=1 // pred_region
      %2375 = dma.done [#allocation17], 128
    $region73: #{tpu_custom_call.1} parent=1 // pred_fallthru
      _
    %2376 = vsyncpa [#allocation5], 1
    %2377 = vsyncpa [#allocation8], 1
    %2378 = vsyncpa [#allocation11], 1
    %2379 = vsyncpa [#allocation14], 1
    %2380 = vsyncpa [#allocation6], 1
    %2381 = vsyncpa [#allocation17], 1

</llo_original>
